<compile_context>
chip_gen: v7x
topology: tpu7x:2x2x1
jax: 0.10.0
libtpu: 0.0.40
codegen_flags: <defaults>
</compile_context>

<pallas_src>
import jax
import jax.numpy as jnp
from jax.experimental import pallas as pl
from jax.experimental.pallas import tpu as pltpu


def _round_up(x, m):
    return ((x + m - 1) // m) * m


def gac_kernel(x_ref, w1_ref, b1_ref, w2_ref, b2_ref, w3_ref, b3_ref, o_ref):
    # x_ref: (TM, Cin) row tile; weights/biases are full (grid-invariant) blocks.
    wdt = w1_ref.dtype                    # bf16 in perf mode, f32 in exact mode
    x = x_ref[...].astype(wdt)

    # Layer 1 (Cin -> 64): K=3 padded on the MXU is a single push, and the MXU
    # has slack once layers 2/3 run in bf16 -- cheaper than lane-broadcast MACs.
    h1 = jnp.dot(x, w1_ref[...], preferred_element_type=jnp.float32) + b1_ref[...]
    h1 = jnp.maximum(h1, 0.0)

    # Layer 2 (64 -> 128) and layer 3 (128 -> 256), f32 accumulation.
    h2 = jnp.dot(h1.astype(wdt), w2_ref[...],
                 preferred_element_type=jnp.float32) + b2_ref[...]
    h2 = jnp.maximum(h2, 0.0)
    out = jnp.dot(h2.astype(wdt), w3_ref[...],
                  preferred_element_type=jnp.float32) + b3_ref[...]

    o_ref[...] = out.astype(o_ref.dtype)


def gac_extractor(x, params, *, tm=2048, out_dtype=None, exact=False):
    """x: (B, N, C_in) float32 -> (B, N, C_out).

    Default (exact=False): bf16 MXU operands, f32 accumulation, bf16 output
    (fastest on all generations; ~1e-2-level relative difference vs f32).
    exact=True: f32 matmuls and f32 output, matching the PyTorch forward.
    """
    w1, b1, w2, b2, w3, b3 = params
    B, N, Cin = x.shape
    H1, H2, Cout = w1.shape[1], w2.shape[1], w3.shape[1]
    M = B * N

    wdt = jnp.float32 if exact else jnp.bfloat16
    if out_dtype is None:
        out_dtype = jnp.float32 if exact else jnp.bfloat16

    w1c, w2c, w3c = (w.astype(wdt) for w in (w1, w2, w3))
    b1r, b2r, b3r = (b.reshape(1, -1).astype(jnp.float32) for b in (b1, b2, b3))

    # Row-tile selection.
    if M <= tm:
        # One block covering the whole array: exempt from the (8,128) rule,
        # single grid step, no padding of any kind.
        tm_eff = M
    else:
        tm_eff = max(8, (tm // 8) * 8)
        n = pl.cdiv(M, tm_eff)
        # v7x shards the "parallel" axis across 2 TensorCores; an even step
        # count avoids one core idling on a trailing odd step.
        if n >= 3 and n % 2 == 1:
            tm_eff = max(8, _round_up(pl.cdiv(M, n + 1), 8))
    n_steps = pl.cdiv(M, tm_eff)

    x_flat = x.reshape(M, Cin)

    full = lambda a: pl.BlockSpec(a.shape, lambda i: (0, 0))

    out_bytes = jnp.dtype(out_dtype).itemsize
    w_bytes = jnp.dtype(wdt).itemsize
    cost = pl.CostEstimate(
        flops=2 * M * (Cin * H1 + H1 * H2 + H2 * Cout),
        transcendentals=0,
        bytes_accessed=(M * Cin * x.dtype.itemsize + M * Cout * out_bytes
                        + (w1.size + w2.size + w3.size) * w_bytes
                        + (H1 + H2 + Cout) * 4),
    )

    out_flat = pl.pallas_call(
        gac_kernel,
        out_shape=jax.ShapeDtypeStruct((M, Cout), out_dtype),
        grid_spec=pltpu.PrefetchScalarGridSpec(
            num_scalar_prefetch=0,
            grid=(n_steps,),
            in_specs=[
                pl.BlockSpec((tm_eff, Cin), lambda i: (i, 0)),
                full(w1c), full(b1r),
                full(w2c), full(b2r),
                full(w3c), full(b3r),
            ],
            out_specs=pl.BlockSpec((tm_eff, Cout), lambda i: (i, 0)),
        ),
        compiler_params=pltpu.CompilerParams(
            dimension_semantics=("parallel",)),
        cost_estimate=cost,
    )(x_flat, w1c, b1r, w2c, b2r, w3c, b3r)

    return out_flat.reshape(B, N, Cout)


def init_params(key, in_channels=3, out_channels=256):
    # Conv1d(kernel=1) weights (out, in, 1) are equivalent to dense (in, out).
    dims = [(in_channels, 64), (64, 128), (128, out_channels)]
    params = []
    for cin, cout in dims:
        kw, kb, key = jax.random.split(key, 3)
        bound = 1.0 / (cin ** 0.5)  # PyTorch default uniform init bound
        w = jax.random.uniform(kw, (cin, cout), jnp.float32, -bound, bound)
        b = jax.random.uniform(kb, (cout,), jnp.float32, -bound, bound)
        params += [w, b]
    return tuple(params)


def reference(x, params):
    w1, b1, w2, b2, w3, b3 = params
    hi = jax.lax.Precision.HIGHEST
    h = jnp.maximum(jnp.dot(x, w1, precision=hi) + b1, 0.0)
    h = jnp.maximum(jnp.dot(h, w2, precision=hi) + b2, 0.0)
    return jnp.dot(h, w3, precision=hi) + b3


if __name__ == "__main__":
    key = jax.random.PRNGKey(0)
    kx, kp = jax.random.split(key)

    B, N, Cin, Cout = 2, 256, 3, 256
    x = jax.random.normal(kx, (B, N, Cin), jnp.float32)
    params = init_params(kp, Cin, Cout)
    ref = reference(x, params)

    # Exact (f32) mode: matches the PyTorch forward numerics.
    out_f32 = jax.block_until_ready(gac_extractor(x, params, exact=True))
    assert out_f32.shape == (B, N, Cout) and out_f32.dtype == jnp.float32
    assert jnp.allclose(out_f32, ref, atol=1e-3, rtol=1e-3)

    # Default perf mode: bf16 MXU operands + bf16 output.
    out_bf16 = jax.block_until_ready(gac_extractor(x, params))
    assert out_bf16.shape == (B, N, Cout) and out_bf16.dtype == jnp.bfloat16
    assert jnp.allclose(out_bf16.astype(jnp.float32), ref, atol=5e-2, rtol=5e-2)

    # Non-tile-divisible M with a forced small tile: exercises the clipped
    # (ragged) last output block -- no pad/slice copy anywhere in the wrapper.
    x2 = jax.random.normal(kx, (1, 300, Cin), jnp.float32)
    ref2 = reference(x2, params)
    out2 = jax.block_until_ready(gac_extractor(x2, params, tm=128, exact=True))
    assert out2.shape == (1, 300, Cout)
    assert jnp.allclose(out2, ref2, atol=1e-3, rtol=1e-3)

    print("KERNEL_OK")
</pallas_src>

<mosaic_0001>
module attributes {stable_mosaic.version = 11 : i64} {
  func.func @gac_kernel(%arg0: i32, %arg1: memref<512x3xf32, #tpu.memory_space<vmem>>, %arg2: memref<3x64xf32, #tpu.memory_space<vmem>>, %arg3: memref<1x64xf32, #tpu.memory_space<vmem>>, %arg4: memref<64x128xf32, #tpu.memory_space<vmem>>, %arg5: memref<1x128xf32, #tpu.memory_space<vmem>>, %arg6: memref<128x256xf32, #tpu.memory_space<vmem>>, %arg7: memref<1x256xf32, #tpu.memory_space<vmem>>, %arg8: memref<512x256xf32, #tpu.memory_space<vmem>>) attributes {dimension_semantics = [#tpu.dimension_semantics<parallel>], iteration_bounds = array<i64: 1>, scalar_prefetch = 0 : i64, scratch_operands = 0 : i64, tpu.core_type = #tpu.core_type<tc>, window_params = [{transform_indices = @transform_0, window_bounds = array<i64: 512, 3>}, {pipeline_mode = #tpu.pipeline_mode<synchronous>, transform_indices = @transform_1, window_bounds = array<i64: 3, 64>}, {pipeline_mode = #tpu.pipeline_mode<synchronous>, transform_indices = @transform_2, window_bounds = array<i64: 1, 64>}, {pipeline_mode = #tpu.pipeline_mode<synchronous>, transform_indices = @transform_3, window_bounds = array<i64: 64, 128>}, {pipeline_mode = #tpu.pipeline_mode<synchronous>, transform_indices = @transform_4, window_bounds = array<i64: 1, 128>}, {pipeline_mode = #tpu.pipeline_mode<synchronous>, transform_indices = @transform_5, window_bounds = array<i64: 128, 256>}, {pipeline_mode = #tpu.pipeline_mode<synchronous>, transform_indices = @transform_6, window_bounds = array<i64: 1, 256>}, {transform_indices = @transform_7, window_bounds = array<i64: 512, 256>}]} {
    %c0 = arith.constant 0 : index
    %c0_0 = arith.constant 0 : index
    %0 = vector.load %arg1[%c0, %c0_0] : memref<512x3xf32, #tpu.memory_space<vmem>>, vector<512x3xf32>
    %c0_1 = arith.constant 0 : index
    %c0_2 = arith.constant 0 : index
    %1 = vector.load %arg2[%c0_1, %c0_2] : memref<3x64xf32, #tpu.memory_space<vmem>>, vector<3x64xf32>
    %cst = arith.constant dense<0.000000e+00> : vector<512x64xf32>
    %2 = tpu.matmul %0, %1, %cst {dimension_numbers = #tpu.dot_dimension_numbers<[1], [0], [0], [1], [0, 0, 1, 1], [], []>} : vector<512x3xf32>, vector<3x64xf32>, vector<512x64xf32> -> vector<512x64xf32>
    %c0_3 = arith.constant 0 : index
    %c0_4 = arith.constant 0 : index
    %3 = vector.load %arg3[%c0_3, %c0_4] : memref<1x64xf32, #tpu.memory_space<vmem>>, vector<1x64xf32>
    %4 = vector.broadcast %3 : vector<1x64xf32> to vector<512x64xf32>
    %5 = arith.addf %2, %4 : vector<512x64xf32>
    %cst_5 = arith.constant 0.000000e+00 : f32
    %6 = vector.broadcast %cst_5 : f32 to vector<512x64xf32>
    %7 = arith.maximumf %5, %6 : vector<512x64xf32>
    %c0_6 = arith.constant 0 : index
    %c0_7 = arith.constant 0 : index
    %8 = vector.load %arg4[%c0_6, %c0_7] : memref<64x128xf32, #tpu.memory_space<vmem>>, vector<64x128xf32>
    %cst_8 = arith.constant dense<0.000000e+00> : vector<512x128xf32>
    %9 = tpu.matmul %7, %8, %cst_8 {dimension_numbers = #tpu.dot_dimension_numbers<[1], [0], [0], [1], [0, 0, 1, 1], [], []>} : vector<512x64xf32>, vector<64x128xf32>, vector<512x128xf32> -> vector<512x128xf32>
    %c0_9 = arith.constant 0 : index
    %c0_10 = arith.constant 0 : index
    %10 = vector.load %arg5[%c0_9, %c0_10] : memref<1x128xf32, #tpu.memory_space<vmem>>, vector<1x128xf32>
    %11 = vector.broadcast %10 : vector<1x128xf32> to vector<512x128xf32>
    %12 = arith.addf %9, %11 : vector<512x128xf32>
    %cst_11 = arith.constant 0.000000e+00 : f32
    %13 = vector.broadcast %cst_11 : f32 to vector<512x128xf32>
    %14 = arith.maximumf %12, %13 : vector<512x128xf32>
    %c0_12 = arith.constant 0 : index
    %c0_13 = arith.constant 0 : index
    %15 = vector.load %arg6[%c0_12, %c0_13] : memref<128x256xf32, #tpu.memory_space<vmem>>, vector<128x256xf32>
    %cst_14 = arith.constant dense<0.000000e+00> : vector<512x256xf32>
    %16 = tpu.matmul %14, %15, %cst_14 {dimension_numbers = #tpu.dot_dimension_numbers<[1], [0], [0], [1], [0, 0, 1, 1], [], []>} : vector<512x128xf32>, vector<128x256xf32>, vector<512x256xf32> -> vector<512x256xf32>
    %c0_15 = arith.constant 0 : index
    %c0_16 = arith.constant 0 : index
    %17 = vector.load %arg7[%c0_15, %c0_16] : memref<1x256xf32, #tpu.memory_space<vmem>>, vector<1x256xf32>
    %18 = vector.broadcast %17 : vector<1x256xf32> to vector<512x256xf32>
    %19 = arith.addf %16, %18 : vector<512x256xf32>
    %c0_17 = arith.constant 0 : index
    %c0_18 = arith.constant 0 : index
    %20 = vector.load %arg8[%c0_17, %c0_18] : memref<512x256xf32, #tpu.memory_space<vmem>>, vector<512x256xf32>
    tpu.vector_store %arg8[%c0_17, %c0_18], %19 {strides = array<i32>} : memref<512x256xf32, #tpu.memory_space<vmem>>, vector<512x256xf32>,
    return
  }
  func.func @transform_0(%arg0: i32) -> (i32, i32) {
    %c0_i32 = arith.constant 0 : i32
    %c0_i32_0 = arith.constant 0 : i32
    return %arg0, %c0_i32 : i32, i32
  }
  func.func @transform_1(%arg0: i32) -> (i32, i32) {
    %c0_i32 = arith.constant 0 : i32
    %c0_i32_0 = arith.constant 0 : i32
    %c0_i32_1 = arith.constant 0 : i32
    return %c0_i32, %c0_i32_0 : i32, i32
  }
  func.func @transform_2(%arg0: i32) -> (i32, i32) {
    %c0_i32 = arith.constant 0 : i32
    %c0_i32_0 = arith.constant 0 : i32
    %c0_i32_1 = arith.constant 0 : i32
    return %c0_i32, %c0_i32_0 : i32, i32
  }
  func.func @transform_3(%arg0: i32) -> (i32, i32) {
    %c0_i32 = arith.constant 0 : i32
    %c0_i32_0 = arith.constant 0 : i32
    %c0_i32_1 = arith.constant 0 : i32
    return %c0_i32, %c0_i32_0 : i32, i32
  }
  func.func @transform_4(%arg0: i32) -> (i32, i32) {
    %c0_i32 = arith.constant 0 : i32
    %c0_i32_0 = arith.constant 0 : i32
    %c0_i32_1 = arith.constant 0 : i32
    return %c0_i32, %c0_i32_0 : i32, i32
  }
  func.func @transform_5(%arg0: i32) -> (i32, i32) {
    %c0_i32 = arith.constant 0 : i32
    %c0_i32_0 = arith.constant 0 : i32
    %c0_i32_1 = arith.constant 0 : i32
    return %c0_i32, %c0_i32_0 : i32, i32
  }
  func.func @transform_6(%arg0: i32) -> (i32, i32) {
    %c0_i32 = arith.constant 0 : i32
    %c0_i32_0 = arith.constant 0 : i32
    %c0_i32_1 = arith.constant 0 : i32
    return %c0_i32, %c0_i32_0 : i32, i32
  }
  func.func @transform_7(%arg0: i32) -> (i32, i32) {
    %c0_i32 = arith.constant 0 : i32
    %c0_i32_0 = arith.constant 0 : i32
    return %arg0, %c0_i32 : i32, i32
  }
}

</mosaic_0001>

<llo_original>
// kernel: tpu_custom_call.1
$region0: #{tpu_custom_call.1}
  #allocation0 [shape = 'u32[]', space=smem, size = 0x4, offset = 0x4, fixed_abs, tag = 'smem constant byte address 0x4 - core index']
  #allocation1 [shape = 'u32[144,128]{1,0:T(1,128)}', space=vmem, size = 0x12000, scoped, tag = 'internal scratch']
  %s0 = inlined_call_operand.vmem [shape: f32[512,3], index: 0, kind: input, shape index: {}]
  %s1 = inlined_call_operand.vmem [shape: f32[3,64], index: 1, kind: input, shape index: {}]
  %s2 = inlined_call_operand.vmem [shape: f32[1,64], index: 2, kind: input, shape index: {}]
  %s3 = inlined_call_operand.vmem [shape: f32[64,128], index: 3, kind: input, shape index: {}]
  %s4 = inlined_call_operand.vmem [shape: f32[1,128], index: 4, kind: input, shape index: {}]
  %s5 = inlined_call_operand.vmem [shape: f32[128,256], index: 5, kind: input, shape index: {}]
  %s6 = inlined_call_operand.vmem [shape: f32[1,256], index: 6, kind: input, shape index: {}]
  %s7 = inlined_call_operand.hbm [shape: f32[512,256], index: 7, kind: output, shape index: {}]
  %s8 = sld [smem:[#allocation0]]
  $region38: #{tpu_custom_call.1} parent=0
    _
  %s10 = ssub.s32 1, %s8
  %s11 = scalar_select 0, %s10, %s8
  $region1: #{tpu_custom_call.1} parent=0
    #allocation2 [shape = 'u8[524288]{0}', space=vmem, size = 0x80000, scoped, tag = 'output window, operand 0, single buffered']
    #allocation3 [shape = 's32[1]{0}', space=sflag, size = 0x4, scoped, tag = 'scoped memory for tpu_custom_call.1']
    %12 = vsyncpa [#allocation3], 0
    // Predicated region
    $region2: #{tpu_custom_call.1} parent=1 // pred_check
      _
    $region3: #{tpu_custom_call.1} parent=1 // pred_check_branch
      %14 = sbr.rel (0) target = $region5
    $region4: #{tpu_custom_call.1} parent=1 // pred_region
      _
    $region5: #{tpu_custom_call.1} parent=1 // pred_fallthru
      _
    // Predicated region
    $region6: #{tpu_custom_call.1} parent=1 // pred_check
      _
    $region7: #{tpu_custom_call.1} parent=1 // pred_check_branch
      %16 = sbr.rel (0) target = $region9
    $region8: #{tpu_custom_call.1} parent=1 // pred_region
      _
    $region9: #{tpu_custom_call.1} parent=1 // pred_fallthru
      _
    // Predicated region
    $region10: #{tpu_custom_call.1} parent=1 // pred_check
      _
    $region11: #{tpu_custom_call.1} parent=1 // pred_check_branch
      %18 = sbr.rel (0) target = $region13
    $region12: #{tpu_custom_call.1} parent=1 // pred_region
      _
    $region13: #{tpu_custom_call.1} parent=1 // pred_fallthru
      _
    // Predicated region
    $region14: #{tpu_custom_call.1} parent=1 // pred_check
      _
    $region15: #{tpu_custom_call.1} parent=1 // pred_check_branch
      %20 = sbr.rel (0) target = $region17
    $region16: #{tpu_custom_call.1} parent=1 // pred_region
      _
    $region17: #{tpu_custom_call.1} parent=1 // pred_fallthru
      _
    // Predicated region
    $region18: #{tpu_custom_call.1} parent=1 // pred_check
      _
    $region19: #{tpu_custom_call.1} parent=1 // pred_check_branch
      %22 = sbr.rel (0) target = $region21
    $region20: #{tpu_custom_call.1} parent=1 // pred_region
      _
    $region21: #{tpu_custom_call.1} parent=1 // pred_fallthru
      _
    // Predicated region
    $region22: #{tpu_custom_call.1} parent=1 // pred_check
      _
    $region23: #{tpu_custom_call.1} parent=1 // pred_check_branch
      %24 = sbr.rel (0) target = $region25
    $region24: #{tpu_custom_call.1} parent=1 // pred_region
      _
    $region25: #{tpu_custom_call.1} parent=1 // pred_fallthru
      _
    // Predicated region
    $region26: #{tpu_custom_call.1} parent=1 // pred_check
      _
    $region27: #{tpu_custom_call.1} parent=1 // pred_check_branch
      %26 = sbr.rel (0) target = $region29
    $region28: #{tpu_custom_call.1} parent=1 // pred_region
      _
    $region29: #{tpu_custom_call.1} parent=1 // pred_fallthru
      _
    %v27 = vld [vmem:[%s0] sm:$0xff]
    %v28 = vld [vmem:[%s0 + $0x8] sm:$0xff]
    %v29 = vld [vmem:[%s0 + $0x10] sm:$0xff]
    %v30 = vld [vmem:[%s0 + $0x18] sm:$0xff]
    %v31 = vld [vmem:[%s0 + $0x20] sm:$0xff]
    %v32 = vld [vmem:[%s0 + $0x28] sm:$0xff]
    %v33 = vld [vmem:[%s0 + $0x30] sm:$0xff]
    %v34 = vld [vmem:[%s0 + $0x38] sm:$0xff]
    %v35 = vld [vmem:[%s0 + $0x40] sm:$0xff]
    %v36 = vld [vmem:[%s0 + $0x48] sm:$0xff]
    %v37 = vld [vmem:[%s0 + $0x50] sm:$0xff]
    %v38 = vld [vmem:[%s0 + $0x58] sm:$0xff]
    %v39 = vld [vmem:[%s0 + $0x60] sm:$0xff]
    %v40 = vld [vmem:[%s0 + $0x68] sm:$0xff]
    %v41 = vld [vmem:[%s0 + $0x70] sm:$0xff]
    %v42 = vld [vmem:[%s0 + $0x78] sm:$0xff]
    %v43 = vld [vmem:[%s0 + $0x80] sm:$0xff]
    %v44 = vld [vmem:[%s0 + $0x88] sm:$0xff]
    %v45 = vld [vmem:[%s0 + $0x90] sm:$0xff]
    %v46 = vld [vmem:[%s0 + $0x98] sm:$0xff]
    %v47 = vld [vmem:[%s0 + $0xa0] sm:$0xff]
    %v48 = vld [vmem:[%s0 + $0xa8] sm:$0xff]
    %v49 = vld [vmem:[%s0 + $0xb0] sm:$0xff]
    %v50 = vld [vmem:[%s0 + $0xb8] sm:$0xff]
    %v51 = vld [vmem:[%s0 + $0xc0] sm:$0xff]
    %v52 = vld [vmem:[%s0 + $0xc8] sm:$0xff]
    %v53 = vld [vmem:[%s0 + $0xd0] sm:$0xff]
    %v54 = vld [vmem:[%s0 + $0xd8] sm:$0xff]
    %v55 = vld [vmem:[%s0 + $0xe0] sm:$0xff]
    %v56 = vld [vmem:[%s0 + $0xe8] sm:$0xff]
    %v57 = vld [vmem:[%s0 + $0xf0] sm:$0xff]
    %v58 = vld [vmem:[%s0 + $0xf8] sm:$0xff]
    %v59 = vld [vmem:[%s0 + $0x100] sm:$0xff]
    %v60 = vld [vmem:[%s0 + $0x108] sm:$0xff]
    %v61 = vld [vmem:[%s0 + $0x110] sm:$0xff]
    %v62 = vld [vmem:[%s0 + $0x118] sm:$0xff]
    %v63 = vld [vmem:[%s0 + $0x120] sm:$0xff]
    %v64 = vld [vmem:[%s0 + $0x128] sm:$0xff]
    %v65 = vld [vmem:[%s0 + $0x130] sm:$0xff]
    %v66 = vld [vmem:[%s0 + $0x138] sm:$0xff]
    %v67 = vld [vmem:[%s0 + $0x140] sm:$0xff]
    %v68 = vld [vmem:[%s0 + $0x148] sm:$0xff]
    %v69 = vld [vmem:[%s0 + $0x150] sm:$0xff]
    %v70 = vld [vmem:[%s0 + $0x158] sm:$0xff]
    %v71 = vld [vmem:[%s0 + $0x160] sm:$0xff]
    %v72 = vld [vmem:[%s0 + $0x168] sm:$0xff]
    %v73 = vld [vmem:[%s0 + $0x170] sm:$0xff]
    %v74 = vld [vmem:[%s0 + $0x178] sm:$0xff]
    %v75 = vld [vmem:[%s0 + $0x180] sm:$0xff]
    %v76 = vld [vmem:[%s0 + $0x188] sm:$0xff]
    %v77 = vld [vmem:[%s0 + $0x190] sm:$0xff]
    %v78 = vld [vmem:[%s0 + $0x198] sm:$0xff]
    %v79 = vld [vmem:[%s0 + $0x1a0] sm:$0xff]
    %v80 = vld [vmem:[%s0 + $0x1a8] sm:$0xff]
    %v81 = vld [vmem:[%s0 + $0x1b0] sm:$0xff]
    %v82 = vld [vmem:[%s0 + $0x1b8] sm:$0xff]
    %v83 = vld [vmem:[%s0 + $0x1c0] sm:$0xff]
    %v84 = vld [vmem:[%s0 + $0x1c8] sm:$0xff]
    %v85 = vld [vmem:[%s0 + $0x1d0] sm:$0xff]
    %v86 = vld [vmem:[%s0 + $0x1d8] sm:$0xff]
    %v87 = vld [vmem:[%s0 + $0x1e0] sm:$0xff]
    %v88 = vld [vmem:[%s0 + $0x1e8] sm:$0xff]
    %v89 = vld [vmem:[%s0 + $0x1f0] sm:$0xff]
    %v90 = vld [vmem:[%s0 + $0x1f8] sm:$0xff]
    %v91 = vld [vmem:[%s1] sm:$0x7]
    %v92 = vld [vmem:[%s2] sm:$0x1]
    %v94 = vlaneseq
    %v95 = vshrl.u32 %v94, 7
    %v96 = vsub.s32 0, %v95
    %v97 = vrot.slane %v92, %v96
    %vm99 = vcmask 23552
    %v101 = vsel %vm99, %v27, 0
    %v104 = vsel %vm99, %v28, 0
    %v107 = vsel %vm99, %v29, 0
    %v110 = vsel %vm99, %v30, 0
    %v113 = vsel %vm99, %v31, 0
    %v116 = vsel %vm99, %v32, 0
    %v119 = vsel %vm99, %v33, 0
    %v122 = vsel %vm99, %v34, 0
    %v125 = vsel %vm99, %v35, 0
    %v128 = vsel %vm99, %v36, 0
    %v131 = vsel %vm99, %v37, 0
    %v134 = vsel %vm99, %v38, 0
    %v137 = vsel %vm99, %v39, 0
    %v140 = vsel %vm99, %v40, 0
    %v143 = vsel %vm99, %v41, 0
    %v146 = vsel %vm99, %v42, 0
    %v149 = vsel %vm99, %v43, 0
    %v152 = vsel %vm99, %v44, 0
    %v155 = vsel %vm99, %v45, 0
    %v158 = vsel %vm99, %v46, 0
    %v161 = vsel %vm99, %v47, 0
    %v164 = vsel %vm99, %v48, 0
    %v167 = vsel %vm99, %v49, 0
    %v170 = vsel %vm99, %v50, 0
    %v173 = vsel %vm99, %v51, 0
    %v176 = vsel %vm99, %v52, 0
    %v179 = vsel %vm99, %v53, 0
    %v182 = vsel %vm99, %v54, 0
    %v185 = vsel %vm99, %v55, 0
    %v188 = vsel %vm99, %v56, 0
    %v191 = vsel %vm99, %v57, 0
    %v194 = vsel %vm99, %v58, 0
    %v197 = vsel %vm99, %v59, 0
    %v200 = vsel %vm99, %v60, 0
    %v203 = vsel %vm99, %v61, 0
    %v206 = vsel %vm99, %v62, 0
    %v209 = vsel %vm99, %v63, 0
    %v212 = vsel %vm99, %v64, 0
    %v215 = vsel %vm99, %v65, 0
    %v218 = vsel %vm99, %v66, 0
    %v221 = vsel %vm99, %v67, 0
    %v224 = vsel %vm99, %v68, 0
    %v227 = vsel %vm99, %v69, 0
    %v230 = vsel %vm99, %v70, 0
    %v233 = vsel %vm99, %v71, 0
    %v236 = vsel %vm99, %v72, 0
    %v239 = vsel %vm99, %v73, 0
    %v242 = vsel %vm99, %v74, 0
    %v245 = vsel %vm99, %v75, 0
    %v248 = vsel %vm99, %v76, 0
    %v251 = vsel %vm99, %v77, 0
    %v254 = vsel %vm99, %v78, 0
    %v257 = vsel %vm99, %v79, 0
    %v260 = vsel %vm99, %v80, 0
    %v263 = vsel %vm99, %v81, 0
    %v266 = vsel %vm99, %v82, 0
    %v269 = vsel %vm99, %v83, 0
    %v272 = vsel %vm99, %v84, 0
    %v275 = vsel %vm99, %v85, 0
    %v278 = vsel %vm99, %v86, 0
    %v281 = vsel %vm99, %v87, 0
    %v284 = vsel %vm99, %v88, 0
    %v287 = vsel %vm99, %v89, 0
    %v290 = vsel %vm99, %v90, 0
    %vm292 = vcmask 1042432
    %v294 = vsel %vm292, %v91, 0
    %296 = vmatprep.subr.mxu0 0.0
    %297 = vmatpush1.msra.mxu0 %v294
    %298 = vmatprep.subr.mxu0 0.0
    %299 = vmatpush1.msra.mxu0 0.0
    %300 = vmatprep.subr.mxu0 0.0
    %301 = vmatpush1.msra.mxu0 0.0
    %302 = vmatprep.subr.mxu0 0.0
    %303 = vmatpush1.msra.mxu0 0.0
    %304 = vmatprep.subr.mxu0 0.0
    %305 = vmatpush1.msra.mxu0 0.0
    %306 = vmatprep.subr.mxu0 0.0
    %307 = vmatpush1.msra.mxu0 0.0
    %308 = vmatprep.subr.mxu0 0.0
    %309 = vmatpush1.msra.mxu0 0.0
    %310 = vmatprep.subr.mxu0 0.0
    %311 = vmatpush1.msra.mxu0 0.0
    %312 = vmatprep.subr.mxu0 0.0
    %313 = vmatpush1.msra.mxu0 0.0
    %314 = vmatprep.subr.mxu0 0.0
    %315 = vmatpush1.msra.mxu0 0.0
    %316 = vmatprep.subr.mxu0 0.0
    %317 = vmatpush1.msra.mxu0 0.0
    %318 = vmatprep.subr.mxu0 0.0
    %319 = vmatpush1.msra.mxu0 0.0
    %320 = vmatprep.subr.mxu0 0.0
    %321 = vmatpush1.msra.mxu0 0.0
    %322 = vmatprep.subr.mxu0 0.0
    %323 = vmatpush1.msra.mxu0 0.0
    %324 = vmatprep.subr.mxu0 0.0
    %325 = vmatpush1.msra.mxu0 0.0
    %326 = vmatprep.subr.mxu0 0.0
    %327 = vmatpush1.msra.mxu0 0.0
    %328 = vmatprep.subr.mxu0 0.0
    %329 = vmatpush1.msra.mxu0 0.0
    %330 = vmatprep.subr.mxu0 0.0
    %331 = vmatpush1.msra.mxu0 0.0
    %332 = vmatprep.subr.mxu0 0.0
    %333 = vmatpush1.msra.mxu0 0.0
    %334 = vmatprep.subr.mxu0 0.0
    %335 = vmatpush1.msra.mxu0 0.0
    %336 = vmatprep.subr.mxu0 0.0
    %337 = vmatpush1.msra.mxu0 0.0
    %338 = vmatprep.subr.mxu0 0.0
    %339 = vmatpush1.msra.mxu0 0.0
    %340 = vmatprep.subr.mxu0 0.0
    %341 = vmatpush1.msra.mxu0 0.0
    %342 = vmatprep.subr.mxu0 0.0
    %343 = vmatpush1.msra.mxu0 0.0
    %344 = vmatprep.subr.mxu0 0.0
    %345 = vmatpush1.msra.mxu0 0.0
    %346 = vmatprep.subr.mxu0 0.0
    %347 = vmatpush1.msra.mxu0 0.0
    %348 = vmatprep.subr.mxu0 0.0
    %349 = vmatpush1.msra.mxu0 0.0
    %350 = vmatprep.subr.mxu0 0.0
    %351 = vmatpush1.msra.mxu0 0.0
    %352 = vmatprep.subr.mxu0 0.0
    %353 = vmatpush1.msra.mxu0 0.0
    %354 = vmatprep.subr.mxu0 0.0
    %355 = vmatpush1.msra.mxu0 0.0
    %356 = vmatprep.subr.mxu0 0.0
    %357 = vmatpush1.msra.mxu0 0.0
    %358 = vmatprep.subr.mxu0 0.0
    %359 = vmatpush1.msra.mxu0 0.0
    %360 = vmatprep.mubr.f32.mxu0 0.0
    %361 = vmatmul.mubr.f32.gmra.mrb[0].mxu0 %v101
    %v362 = vpop.f32.mrb[0].mxu0
    %v363 = vadd.f32 %v97, %v362
    %v364 = vpop.f32.mrb[0].mxu0
    %365 = vmatprep.mubr.f32.mxu0 0.0
    %366 = vmatmul.mubr.f32.gmra.mrb[0].mxu0 %v104
    %v367 = vpop.f32.mrb[0].mxu0
    %v368 = vadd.f32 %v97, %v367
    %v369 = vpop.f32.mrb[0].mxu0
    %370 = vmatprep.mubr.f32.mxu0 0.0
    %371 = vmatmul.mubr.f32.gmra.mrb[0].mxu0 %v107
    %v372 = vpop.f32.mrb[0].mxu0
    %v373 = vadd.f32 %v97, %v372
    %v374 = vpop.f32.mrb[0].mxu0
    %375 = vmatprep.mubr.f32.mxu0 0.0
    %376 = vmatmul.mubr.f32.gmra.mrb[0].mxu0 %v110
    %v377 = vpop.f32.mrb[0].mxu0
    %v378 = vadd.f32 %v97, %v377
    %v379 = vpop.f32.mrb[0].mxu0
    %380 = vmatprep.mubr.f32.mxu0 0.0
    %381 = vmatmul.mubr.f32.gmra.mrb[0].mxu0 %v113
    %v382 = vpop.f32.mrb[0].mxu0
    %v383 = vadd.f32 %v97, %v382
    %v384 = vpop.f32.mrb[0].mxu0
    %385 = vmatprep.mubr.f32.mxu0 0.0
    %386 = vmatmul.mubr.f32.gmra.mrb[0].mxu0 %v116
    %v387 = vpop.f32.mrb[0].mxu0
    %v388 = vadd.f32 %v97, %v387
    %v389 = vpop.f32.mrb[0].mxu0
    %390 = vmatprep.mubr.f32.mxu0 0.0
    %391 = vmatmul.mubr.f32.gmra.mrb[0].mxu0 %v119
    %v392 = vpop.f32.mrb[0].mxu0
    %v393 = vadd.f32 %v97, %v392
    %v394 = vpop.f32.mrb[0].mxu0
    %395 = vmatprep.mubr.f32.mxu0 0.0
    %396 = vmatmul.mubr.f32.gmra.mrb[0].mxu0 %v122
    %v397 = vpop.f32.mrb[0].mxu0
    %v398 = vadd.f32 %v97, %v397
    %v399 = vpop.f32.mrb[0].mxu0
    %400 = vmatprep.mubr.f32.mxu0 0.0
    %401 = vmatmul.mubr.f32.gmra.mrb[0].mxu0 %v125
    %v402 = vpop.f32.mrb[0].mxu0
    %v403 = vadd.f32 %v97, %v402
    %v404 = vpop.f32.mrb[0].mxu0
    %405 = vmatprep.mubr.f32.mxu0 0.0
    %406 = vmatmul.mubr.f32.gmra.mrb[0].mxu0 %v128
    %v407 = vpop.f32.mrb[0].mxu0
    %v408 = vadd.f32 %v97, %v407
    %v409 = vpop.f32.mrb[0].mxu0
    %410 = vmatprep.mubr.f32.mxu0 0.0
    %411 = vmatmul.mubr.f32.gmra.mrb[0].mxu0 %v131
    %v412 = vpop.f32.mrb[0].mxu0
    %v413 = vadd.f32 %v97, %v412
    %v414 = vpop.f32.mrb[0].mxu0
    %415 = vmatprep.mubr.f32.mxu0 0.0
    %416 = vmatmul.mubr.f32.gmra.mrb[0].mxu0 %v134
    %v417 = vpop.f32.mrb[0].mxu0
    %v418 = vadd.f32 %v97, %v417
    %v419 = vpop.f32.mrb[0].mxu0
    %420 = vmatprep.mubr.f32.mxu0 0.0
    %421 = vmatmul.mubr.f32.gmra.mrb[0].mxu0 %v137
    %v422 = vpop.f32.mrb[0].mxu0
    %v423 = vadd.f32 %v97, %v422
    %v424 = vpop.f32.mrb[0].mxu0
    %425 = vmatprep.mubr.f32.mxu0 0.0
    %426 = vmatmul.mubr.f32.gmra.mrb[0].mxu0 %v140
    %v427 = vpop.f32.mrb[0].mxu0
    %v428 = vadd.f32 %v97, %v427
    %v429 = vpop.f32.mrb[0].mxu0
    %430 = vmatprep.mubr.f32.mxu0 0.0
    %431 = vmatmul.mubr.f32.gmra.mrb[0].mxu0 %v143
    %v432 = vpop.f32.mrb[0].mxu0
    %v433 = vadd.f32 %v97, %v432
    %v434 = vpop.f32.mrb[0].mxu0
    %435 = vmatprep.mubr.f32.mxu0 0.0
    %436 = vmatmul.mubr.f32.gmra.mrb[0].mxu0 %v146
    %v437 = vpop.f32.mrb[0].mxu0
    %v438 = vadd.f32 %v97, %v437
    %v439 = vpop.f32.mrb[0].mxu0
    %440 = vmatprep.mubr.f32.mxu0 0.0
    %441 = vmatmul.mubr.f32.gmra.mrb[0].mxu0 %v149
    %v442 = vpop.f32.mrb[0].mxu0
    %v443 = vadd.f32 %v97, %v442
    %v444 = vpop.f32.mrb[0].mxu0
    %445 = vmatprep.mubr.f32.mxu0 0.0
    %446 = vmatmul.mubr.f32.gmra.mrb[0].mxu0 %v152
    %v447 = vpop.f32.mrb[0].mxu0
    %v448 = vadd.f32 %v97, %v447
    %v449 = vpop.f32.mrb[0].mxu0
    %450 = vmatprep.mubr.f32.mxu0 0.0
    %451 = vmatmul.mubr.f32.gmra.mrb[0].mxu0 %v155
    %v452 = vpop.f32.mrb[0].mxu0
    %v453 = vadd.f32 %v97, %v452
    %v454 = vpop.f32.mrb[0].mxu0
    %455 = vmatprep.mubr.f32.mxu0 0.0
    %456 = vmatmul.mubr.f32.gmra.mrb[0].mxu0 %v158
    %v457 = vpop.f32.mrb[0].mxu0
    %v458 = vadd.f32 %v97, %v457
    %v459 = vpop.f32.mrb[0].mxu0
    %460 = vmatprep.mubr.f32.mxu0 0.0
    %461 = vmatmul.mubr.f32.gmra.mrb[0].mxu0 %v161
    %v462 = vpop.f32.mrb[0].mxu0
    %v463 = vadd.f32 %v97, %v462
    %v464 = vpop.f32.mrb[0].mxu0
    %465 = vmatprep.mubr.f32.mxu0 0.0
    %466 = vmatmul.mubr.f32.gmra.mrb[0].mxu0 %v164
    %v467 = vpop.f32.mrb[0].mxu0
    %v468 = vadd.f32 %v97, %v467
    %v469 = vpop.f32.mrb[0].mxu0
    %470 = vmatprep.mubr.f32.mxu0 0.0
    %471 = vmatmul.mubr.f32.gmra.mrb[0].mxu0 %v167
    %v472 = vpop.f32.mrb[0].mxu0
    %v473 = vadd.f32 %v97, %v472
    %v474 = vpop.f32.mrb[0].mxu0
    %475 = vmatprep.mubr.f32.mxu0 0.0
    %476 = vmatmul.mubr.f32.gmra.mrb[0].mxu0 %v170
    %v477 = vpop.f32.mrb[0].mxu0
    %v478 = vadd.f32 %v97, %v477
    %v479 = vpop.f32.mrb[0].mxu0
    %480 = vmatprep.mubr.f32.mxu0 0.0
    %481 = vmatmul.mubr.f32.gmra.mrb[0].mxu0 %v173
    %v482 = vpop.f32.mrb[0].mxu0
    %v483 = vadd.f32 %v97, %v482
    %v484 = vpop.f32.mrb[0].mxu0
    %485 = vmatprep.mubr.f32.mxu0 0.0
    %486 = vmatmul.mubr.f32.gmra.mrb[0].mxu0 %v176
    %v487 = vpop.f32.mrb[0].mxu0
    %v488 = vadd.f32 %v97, %v487
    %v489 = vpop.f32.mrb[0].mxu0
    %490 = vmatprep.mubr.f32.mxu0 0.0
    %491 = vmatmul.mubr.f32.gmra.mrb[0].mxu0 %v179
    %v492 = vpop.f32.mrb[0].mxu0
    %v493 = vadd.f32 %v97, %v492
    %v494 = vpop.f32.mrb[0].mxu0
    %495 = vmatprep.mubr.f32.mxu0 0.0
    %496 = vmatmul.mubr.f32.gmra.mrb[0].mxu0 %v182
    %v497 = vpop.f32.mrb[0].mxu0
    %v498 = vadd.f32 %v97, %v497
    %v499 = vpop.f32.mrb[0].mxu0
    %500 = vmatprep.mubr.f32.mxu0 0.0
    %501 = vmatmul.mubr.f32.gmra.mrb[0].mxu0 %v185
    %v502 = vpop.f32.mrb[0].mxu0
    %v503 = vadd.f32 %v97, %v502
    %v504 = vpop.f32.mrb[0].mxu0
    %505 = vmatprep.mubr.f32.mxu0 0.0
    %506 = vmatmul.mubr.f32.gmra.mrb[0].mxu0 %v188
    %v507 = vpop.f32.mrb[0].mxu0
    %v508 = vadd.f32 %v97, %v507
    %v509 = vpop.f32.mrb[0].mxu0
    %510 = vmatprep.mubr.f32.mxu0 0.0
    %511 = vmatmul.mubr.f32.gmra.mrb[0].mxu0 %v191
    %v512 = vpop.f32.mrb[0].mxu0
    %v513 = vadd.f32 %v97, %v512
    %v514 = vpop.f32.mrb[0].mxu0
    %515 = vmatprep.mubr.f32.mxu0 0.0
    %516 = vmatmul.mubr.f32.gmra.mrb[0].mxu0 %v194
    %v517 = vpop.f32.mrb[0].mxu0
    %v518 = vadd.f32 %v97, %v517
    %v519 = vpop.f32.mrb[0].mxu0
    %520 = vmatprep.mubr.f32.mxu0 0.0
    %521 = vmatmul.mubr.f32.gmra.mrb[0].mxu0 %v197
    %v522 = vpop.f32.mrb[0].mxu0
    %v523 = vadd.f32 %v97, %v522
    %v524 = vpop.f32.mrb[0].mxu0
    %525 = vmatprep.mubr.f32.mxu0 0.0
    %526 = vmatmul.mubr.f32.gmra.mrb[0].mxu0 %v200
    %v527 = vpop.f32.mrb[0].mxu0
    %v528 = vadd.f32 %v97, %v527
    %v529 = vpop.f32.mrb[0].mxu0
    %530 = vmatprep.mubr.f32.mxu0 0.0
    %531 = vmatmul.mubr.f32.gmra.mrb[0].mxu0 %v203
    %v532 = vpop.f32.mrb[0].mxu0
    %v533 = vadd.f32 %v97, %v532
    %v534 = vpop.f32.mrb[0].mxu0
    %535 = vmatprep.mubr.f32.mxu0 0.0
    %536 = vmatmul.mubr.f32.gmra.mrb[0].mxu0 %v206
    %v537 = vpop.f32.mrb[0].mxu0
    %v538 = vadd.f32 %v97, %v537
    %v539 = vpop.f32.mrb[0].mxu0
    %540 = vmatprep.mubr.f32.mxu0 0.0
    %541 = vmatmul.mubr.f32.gmra.mrb[0].mxu0 %v209
    %v542 = vpop.f32.mrb[0].mxu0
    %v543 = vadd.f32 %v97, %v542
    %v544 = vpop.f32.mrb[0].mxu0
    %545 = vmatprep.mubr.f32.mxu0 0.0
    %546 = vmatmul.mubr.f32.gmra.mrb[0].mxu0 %v212
    %v547 = vpop.f32.mrb[0].mxu0
    %v548 = vadd.f32 %v97, %v547
    %v549 = vpop.f32.mrb[0].mxu0
    %550 = vmatprep.mubr.f32.mxu0 0.0
    %551 = vmatmul.mubr.f32.gmra.mrb[0].mxu0 %v215
    %v552 = vpop.f32.mrb[0].mxu0
    %v553 = vadd.f32 %v97, %v552
    %v554 = vpop.f32.mrb[0].mxu0
    %555 = vmatprep.mubr.f32.mxu0 0.0
    %556 = vmatmul.mubr.f32.gmra.mrb[0].mxu0 %v218
    %v557 = vpop.f32.mrb[0].mxu0
    %v558 = vadd.f32 %v97, %v557
    %v559 = vpop.f32.mrb[0].mxu0
    %560 = vmatprep.mubr.f32.mxu0 0.0
    %561 = vmatmul.mubr.f32.gmra.mrb[0].mxu0 %v221
    %v562 = vpop.f32.mrb[0].mxu0
    %v563 = vadd.f32 %v97, %v562
    %v564 = vpop.f32.mrb[0].mxu0
    %565 = vmatprep.mubr.f32.mxu0 0.0
    %566 = vmatmul.mubr.f32.gmra.mrb[0].mxu0 %v224
    %v567 = vpop.f32.mrb[0].mxu0
    %v568 = vadd.f32 %v97, %v567
    %v569 = vpop.f32.mrb[0].mxu0
    %570 = vmatprep.mubr.f32.mxu0 0.0
    %571 = vmatmul.mubr.f32.gmra.mrb[0].mxu0 %v227
    %v572 = vpop.f32.mrb[0].mxu0
    %v573 = vadd.f32 %v97, %v572
    %v574 = vpop.f32.mrb[0].mxu0
    %575 = vmatprep.mubr.f32.mxu0 0.0
    %576 = vmatmul.mubr.f32.gmra.mrb[0].mxu0 %v230
    %v577 = vpop.f32.mrb[0].mxu0
    %v578 = vadd.f32 %v97, %v577
    %v579 = vpop.f32.mrb[0].mxu0
    %580 = vmatprep.mubr.f32.mxu0 0.0
    %581 = vmatmul.mubr.f32.gmra.mrb[0].mxu0 %v233
    %v582 = vpop.f32.mrb[0].mxu0
    %v583 = vadd.f32 %v97, %v582
    %v584 = vpop.f32.mrb[0].mxu0
    %585 = vmatprep.mubr.f32.mxu0 0.0
    %586 = vmatmul.mubr.f32.gmra.mrb[0].mxu0 %v236
    %v587 = vpop.f32.mrb[0].mxu0
    %v588 = vadd.f32 %v97, %v587
    %v589 = vpop.f32.mrb[0].mxu0
    %590 = vmatprep.mubr.f32.mxu0 0.0
    %591 = vmatmul.mubr.f32.gmra.mrb[0].mxu0 %v239
    %v592 = vpop.f32.mrb[0].mxu0
    %v593 = vadd.f32 %v97, %v592
    %v594 = vpop.f32.mrb[0].mxu0
    %595 = vmatprep.mubr.f32.mxu0 0.0
    %596 = vmatmul.mubr.f32.gmra.mrb[0].mxu0 %v242
    %v597 = vpop.f32.mrb[0].mxu0
    %v598 = vadd.f32 %v97, %v597
    %v599 = vpop.f32.mrb[0].mxu0
    %600 = vmatprep.mubr.f32.mxu0 0.0
    %601 = vmatmul.mubr.f32.gmra.mrb[0].mxu0 %v245
    %v602 = vpop.f32.mrb[0].mxu0
    %v603 = vadd.f32 %v97, %v602
    %v604 = vpop.f32.mrb[0].mxu0
    %605 = vmatprep.mubr.f32.mxu0 0.0
    %606 = vmatmul.mubr.f32.gmra.mrb[0].mxu0 %v248
    %v607 = vpop.f32.mrb[0].mxu0
    %v608 = vadd.f32 %v97, %v607
    %v609 = vpop.f32.mrb[0].mxu0
    %610 = vmatprep.mubr.f32.mxu0 0.0
    %611 = vmatmul.mubr.f32.gmra.mrb[0].mxu0 %v251
    %v612 = vpop.f32.mrb[0].mxu0
    %v613 = vadd.f32 %v97, %v612
    %v614 = vpop.f32.mrb[0].mxu0
    %615 = vmatprep.mubr.f32.mxu0 0.0
    %616 = vmatmul.mubr.f32.gmra.mrb[0].mxu0 %v254
    %v617 = vpop.f32.mrb[0].mxu0
    %v618 = vadd.f32 %v97, %v617
    %v619 = vpop.f32.mrb[0].mxu0
    %620 = vmatprep.mubr.f32.mxu0 0.0
    %621 = vmatmul.mubr.f32.gmra.mrb[0].mxu0 %v257
    %v622 = vpop.f32.mrb[0].mxu0
    %v623 = vadd.f32 %v97, %v622
    %v624 = vpop.f32.mrb[0].mxu0
    %625 = vmatprep.mubr.f32.mxu0 0.0
    %626 = vmatmul.mubr.f32.gmra.mrb[0].mxu0 %v260
    %v627 = vpop.f32.mrb[0].mxu0
    %v628 = vadd.f32 %v97, %v627
    %v629 = vpop.f32.mrb[0].mxu0
    %630 = vmatprep.mubr.f32.mxu0 0.0
    %631 = vmatmul.mubr.f32.gmra.mrb[0].mxu0 %v263
    %v632 = vpop.f32.mrb[0].mxu0
    %v633 = vadd.f32 %v97, %v632
    %v634 = vpop.f32.mrb[0].mxu0
    %635 = vmatprep.mubr.f32.mxu0 0.0
    %636 = vmatmul.mubr.f32.gmra.mrb[0].mxu0 %v266
    %v637 = vpop.f32.mrb[0].mxu0
    %v638 = vadd.f32 %v97, %v637
    %v639 = vpop.f32.mrb[0].mxu0
    %640 = vmatprep.mubr.f32.mxu0 0.0
    %641 = vmatmul.mubr.f32.gmra.mrb[0].mxu0 %v269
    %v642 = vpop.f32.mrb[0].mxu0
    %v643 = vadd.f32 %v97, %v642
    %v644 = vpop.f32.mrb[0].mxu0
    %645 = vmatprep.mubr.f32.mxu0 0.0
    %646 = vmatmul.mubr.f32.gmra.mrb[0].mxu0 %v272
    %v647 = vpop.f32.mrb[0].mxu0
    %v648 = vadd.f32 %v97, %v647
    %v649 = vpop.f32.mrb[0].mxu0
    %650 = vmatprep.mubr.f32.mxu0 0.0
    %651 = vmatmul.mubr.f32.gmra.mrb[0].mxu0 %v275
    %v652 = vpop.f32.mrb[0].mxu0
    %v653 = vadd.f32 %v97, %v652
    %v654 = vpop.f32.mrb[0].mxu0
    %655 = vmatprep.mubr.f32.mxu0 0.0
    %656 = vmatmul.mubr.f32.gmra.mrb[0].mxu0 %v278
    %v657 = vpop.f32.mrb[0].mxu0
    %v658 = vadd.f32 %v97, %v657
    %v659 = vpop.f32.mrb[0].mxu0
    %660 = vmatprep.mubr.f32.mxu0 0.0
    %661 = vmatmul.mubr.f32.gmra.mrb[0].mxu0 %v281
    %v662 = vpop.f32.mrb[0].mxu0
    %v663 = vadd.f32 %v97, %v662
    %v664 = vpop.f32.mrb[0].mxu0
    %665 = vmatprep.mubr.f32.mxu0 0.0
    %666 = vmatmul.mubr.f32.gmra.mrb[0].mxu0 %v284
    %v667 = vpop.f32.mrb[0].mxu0
    %v668 = vadd.f32 %v97, %v667
    %v669 = vpop.f32.mrb[0].mxu0
    %670 = vmatprep.mubr.f32.mxu0 0.0
    %671 = vmatmul.mubr.f32.gmra.mrb[0].mxu0 %v287
    %v672 = vpop.f32.mrb[0].mxu0
    %v673 = vadd.f32 %v97, %v672
    %v674 = vpop.f32.mrb[0].mxu0
    %675 = vmatprep.mubr.f32.mxu0 0.0
    %676 = vmatmul.mubr.f32.gmra.mrb[0].mxu0 %v290
    %v677 = vpop.f32.mrb[0].mxu0
    %v678 = vadd.f32 %v97, %v677
    %v679 = vpop.f32.mrb[0].mxu0
    %680 = vdwg.mxu0
    %v681 = vmax.f32 %v363, 0.0
    %v682 = vmax.f32 %v368, 0.0
    %v683 = vmax.f32 %v373, 0.0
    %v684 = vmax.f32 %v378, 0.0
    %v685 = vmax.f32 %v383, 0.0
    %v686 = vmax.f32 %v388, 0.0
    %v687 = vmax.f32 %v393, 0.0
    %v688 = vmax.f32 %v398, 0.0
    %v689 = vmax.f32 %v403, 0.0
    %v690 = vmax.f32 %v408, 0.0
    %v691 = vmax.f32 %v413, 0.0
    %v692 = vmax.f32 %v418, 0.0
    %v693 = vmax.f32 %v423, 0.0
    %v694 = vmax.f32 %v428, 0.0
    %v695 = vmax.f32 %v433, 0.0
    %v696 = vmax.f32 %v438, 0.0
    %v697 = vmax.f32 %v443, 0.0
    %v698 = vmax.f32 %v448, 0.0
    %v699 = vmax.f32 %v453, 0.0
    %v700 = vmax.f32 %v458, 0.0
    %v701 = vmax.f32 %v463, 0.0
    %v702 = vmax.f32 %v468, 0.0
    %v703 = vmax.f32 %v473, 0.0
    %v704 = vmax.f32 %v478, 0.0
    %v705 = vmax.f32 %v483, 0.0
    %v706 = vmax.f32 %v488, 0.0
    %v707 = vmax.f32 %v493, 0.0
    %v708 = vmax.f32 %v498, 0.0
    %v709 = vmax.f32 %v503, 0.0
    %v710 = vmax.f32 %v508, 0.0
    %v711 = vmax.f32 %v513, 0.0
    %v712 = vmax.f32 %v518, 0.0
    %v713 = vmax.f32 %v523, 0.0
    %v714 = vmax.f32 %v528, 0.0
    %v715 = vmax.f32 %v533, 0.0
    %v716 = vmax.f32 %v538, 0.0
    %v717 = vmax.f32 %v543, 0.0
    %v718 = vmax.f32 %v548, 0.0
    %v719 = vmax.f32 %v553, 0.0
    %v720 = vmax.f32 %v558, 0.0
    %v721 = vmax.f32 %v563, 0.0
    %v722 = vmax.f32 %v568, 0.0
    %v723 = vmax.f32 %v573, 0.0
    %v724 = vmax.f32 %v578, 0.0
    %v725 = vmax.f32 %v583, 0.0
    %v726 = vmax.f32 %v588, 0.0
    %v727 = vmax.f32 %v593, 0.0
    %v728 = vmax.f32 %v598, 0.0
    %v729 = vmax.f32 %v603, 0.0
    %v730 = vmax.f32 %v608, 0.0
    %v731 = vmax.f32 %v613, 0.0
    %v732 = vmax.f32 %v618, 0.0
    %v733 = vmax.f32 %v623, 0.0
    %v734 = vmax.f32 %v628, 0.0
    %v735 = vmax.f32 %v633, 0.0
    %v736 = vmax.f32 %v638, 0.0
    %v737 = vmax.f32 %v643, 0.0
    %v738 = vmax.f32 %v648, 0.0
    %v739 = vmax.f32 %v653, 0.0
    %v740 = vmax.f32 %v658, 0.0
    %v741 = vmax.f32 %v663, 0.0
    %v742 = vmax.f32 %v668, 0.0
    %v743 = vmax.f32 %v673, 0.0
    %v744 = vmax.f32 %v678, 0.0
    %v745 = vld [vmem:[%s3] sm:$0xff]
    %v746 = vld [vmem:[%s3 + $0x8] sm:$0xff]
    %v747 = vld [vmem:[%s3 + $0x10] sm:$0xff]
    %v748 = vld [vmem:[%s3 + $0x18] sm:$0xff]
    %v749 = vld [vmem:[%s3 + $0x20] sm:$0xff]
    %v750 = vld [vmem:[%s3 + $0x28] sm:$0xff]
    %v751 = vld [vmem:[%s3 + $0x30] sm:$0xff]
    %v752 = vld [vmem:[%s3 + $0x38] sm:$0xff]
    %v753 = vld [vmem:[%s4] sm:$0x1]
    %v755 = vlaneseq
    %v756 = vshrl.u32 %v755, 7
    %v757 = vsub.s32 0, %v756
    %v758 = vrot.slane %v753, %v757
    %vm760 = vcmask 523264
    %v762 = vsel %vm760, %v681, 0
    %v765 = vsel %vm760, %v682, 0
    %v768 = vsel %vm760, %v683, 0
    %v771 = vsel %vm760, %v684, 0
    %v774 = vsel %vm760, %v685, 0
    %v777 = vsel %vm760, %v686, 0
    %v780 = vsel %vm760, %v687, 0
    %v783 = vsel %vm760, %v688, 0
    %v786 = vsel %vm760, %v689, 0
    %v789 = vsel %vm760, %v690, 0
    %v792 = vsel %vm760, %v691, 0
    %v795 = vsel %vm760, %v692, 0
    %v798 = vsel %vm760, %v693, 0
    %v801 = vsel %vm760, %v694, 0
    %v804 = vsel %vm760, %v695, 0
    %v807 = vsel %vm760, %v696, 0
    %v810 = vsel %vm760, %v697, 0
    %v813 = vsel %vm760, %v698, 0
    %v816 = vsel %vm760, %v699, 0
    %v819 = vsel %vm760, %v700, 0
    %v822 = vsel %vm760, %v701, 0
    %v825 = vsel %vm760, %v702, 0
    %v828 = vsel %vm760, %v703, 0
    %v831 = vsel %vm760, %v704, 0
    %v834 = vsel %vm760, %v705, 0
    %v837 = vsel %vm760, %v706, 0
    %v840 = vsel %vm760, %v707, 0
    %v843 = vsel %vm760, %v708, 0
    %v846 = vsel %vm760, %v709, 0
    %v849 = vsel %vm760, %v710, 0
    %v852 = vsel %vm760, %v711, 0
    %v855 = vsel %vm760, %v712, 0
    %v858 = vsel %vm760, %v713, 0
    %v861 = vsel %vm760, %v714, 0
    %v864 = vsel %vm760, %v715, 0
    %v867 = vsel %vm760, %v716, 0
    %v870 = vsel %vm760, %v717, 0
    %v873 = vsel %vm760, %v718, 0
    %v876 = vsel %vm760, %v719, 0
    %v879 = vsel %vm760, %v720, 0
    %v882 = vsel %vm760, %v721, 0
    %v885 = vsel %vm760, %v722, 0
    %v888 = vsel %vm760, %v723, 0
    %v891 = vsel %vm760, %v724, 0
    %v894 = vsel %vm760, %v725, 0
    %v897 = vsel %vm760, %v726, 0
    %v900 = vsel %vm760, %v727, 0
    %v903 = vsel %vm760, %v728, 0
    %v906 = vsel %vm760, %v729, 0
    %v909 = vsel %vm760, %v730, 0
    %v912 = vsel %vm760, %v731, 0
    %v915 = vsel %vm760, %v732, 0
    %v918 = vsel %vm760, %v733, 0
    %v921 = vsel %vm760, %v734, 0
    %v924 = vsel %vm760, %v735, 0
    %v927 = vsel %vm760, %v736, 0
    %v930 = vsel %vm760, %v737, 0
    %v933 = vsel %vm760, %v738, 0
    %v936 = vsel %vm760, %v739, 0
    %v939 = vsel %vm760, %v740, 0
    %v942 = vsel %vm760, %v741, 0
    %v945 = vsel %vm760, %v742, 0
    %v948 = vsel %vm760, %v743, 0
    %v951 = vsel %vm760, %v744, 0
    %953 = vmatprep.subr.mxu0 0.0
    %954 = vmatpush1.msra.mxu0 %v745
    %955 = vmatprep.subr.mxu0 0.0
    %956 = vmatpush1.msra.mxu0 %v746
    %957 = vmatprep.subr.mxu0 0.0
    %958 = vmatpush1.msra.mxu0 %v747
    %959 = vmatprep.subr.mxu0 0.0
    %960 = vmatpush1.msra.mxu0 %v748
    %961 = vmatprep.subr.mxu0 0.0
    %962 = vmatpush1.msra.mxu0 %v749
    %963 = vmatprep.subr.mxu0 0.0
    %964 = vmatpush1.msra.mxu0 %v750
    %965 = vmatprep.subr.mxu0 0.0
    %966 = vmatpush1.msra.mxu0 %v751
    %967 = vmatprep.subr.mxu0 0.0
    %968 = vmatpush1.msra.mxu0 %v752
    %969 = vmatprep.subr.mxu0 0.0
    %970 = vmatpush1.msra.mxu0 0.0
    %971 = vmatprep.subr.mxu0 0.0
    %972 = vmatpush1.msra.mxu0 0.0
    %973 = vmatprep.subr.mxu0 0.0
    %974 = vmatpush1.msra.mxu0 0.0
    %975 = vmatprep.subr.mxu0 0.0
    %976 = vmatpush1.msra.mxu0 0.0
    %977 = vmatprep.subr.mxu0 0.0
    %978 = vmatpush1.msra.mxu0 0.0
    %979 = vmatprep.subr.mxu0 0.0
    %980 = vmatpush1.msra.mxu0 0.0
    %981 = vmatprep.subr.mxu0 0.0
    %982 = vmatpush1.msra.mxu0 0.0
    %983 = vmatprep.subr.mxu0 0.0
    %984 = vmatpush1.msra.mxu0 0.0
    %985 = vmatprep.subr.mxu0 0.0
    %986 = vmatpush1.msra.mxu0 0.0
    %987 = vmatprep.subr.mxu0 0.0
    %988 = vmatpush1.msra.mxu0 0.0
    %989 = vmatprep.subr.mxu0 0.0
    %990 = vmatpush1.msra.mxu0 0.0
    %991 = vmatprep.subr.mxu0 0.0
    %992 = vmatpush1.msra.mxu0 0.0
    %993 = vmatprep.subr.mxu0 0.0
    %994 = vmatpush1.msra.mxu0 0.0
    %995 = vmatprep.subr.mxu0 0.0
    %996 = vmatpush1.msra.mxu0 0.0
    %997 = vmatprep.subr.mxu0 0.0
    %998 = vmatpush1.msra.mxu0 0.0
    %999 = vmatprep.subr.mxu0 0.0
    %1000 = vmatpush1.msra.mxu0 0.0
    %1001 = vmatprep.subr.mxu0 0.0
    %1002 = vmatpush1.msra.mxu0 0.0
    %1003 = vmatprep.subr.mxu0 0.0
    %1004 = vmatpush1.msra.mxu0 0.0
    %1005 = vmatprep.subr.mxu0 0.0
    %1006 = vmatpush1.msra.mxu0 0.0
    %1007 = vmatprep.subr.mxu0 0.0
    %1008 = vmatpush1.msra.mxu0 0.0
    %1009 = vmatprep.subr.mxu0 0.0
    %1010 = vmatpush1.msra.mxu0 0.0
    %1011 = vmatprep.subr.mxu0 0.0
    %1012 = vmatpush1.msra.mxu0 0.0
    %1013 = vmatprep.subr.mxu0 0.0
    %1014 = vmatpush1.msra.mxu0 0.0
    %1015 = vmatprep.subr.mxu0 0.0
    %1016 = vmatpush1.msra.mxu0 0.0
    %1017 = vmatprep.mubr.f32.mxu0 0.0
    %1018 = vmatmul.mubr.f32.gmra.mrb[0].mxu0 %v762
    %v1019 = vpop.f32.mrb[0].mxu0
    %v1020 = vadd.f32 %v758, %v1019
    %v1021 = vpop.f32.mrb[0].mxu0
    %1022 = vmatprep.mubr.f32.mxu0 0.0
    %1023 = vmatmul.mubr.f32.gmra.mrb[0].mxu0 %v765
    %v1024 = vpop.f32.mrb[0].mxu0
    %v1025 = vadd.f32 %v758, %v1024
    %v1026 = vpop.f32.mrb[0].mxu0
    %1027 = vmatprep.mubr.f32.mxu0 0.0
    %1028 = vmatmul.mubr.f32.gmra.mrb[0].mxu0 %v768
    %v1029 = vpop.f32.mrb[0].mxu0
    %v1030 = vadd.f32 %v758, %v1029
    %v1031 = vpop.f32.mrb[0].mxu0
    %1032 = vmatprep.mubr.f32.mxu0 0.0
    %1033 = vmatmul.mubr.f32.gmra.mrb[0].mxu0 %v771
    %v1034 = vpop.f32.mrb[0].mxu0
    %v1035 = vadd.f32 %v758, %v1034
    %v1036 = vpop.f32.mrb[0].mxu0
    %1037 = vmatprep.mubr.f32.mxu0 0.0
    %1038 = vmatmul.mubr.f32.gmra.mrb[0].mxu0 %v774
    %v1039 = vpop.f32.mrb[0].mxu0
    %v1040 = vadd.f32 %v758, %v1039
    %v1041 = vpop.f32.mrb[0].mxu0
    %1042 = vmatprep.mubr.f32.mxu0 0.0
    %1043 = vmatmul.mubr.f32.gmra.mrb[0].mxu0 %v777
    %v1044 = vpop.f32.mrb[0].mxu0
    %v1045 = vadd.f32 %v758, %v1044
    %v1046 = vpop.f32.mrb[0].mxu0
    %1047 = vmatprep.mubr.f32.mxu0 0.0
    %1048 = vmatmul.mubr.f32.gmra.mrb[0].mxu0 %v780
    %v1049 = vpop.f32.mrb[0].mxu0
    %v1050 = vadd.f32 %v758, %v1049
    %v1051 = vpop.f32.mrb[0].mxu0
    %1052 = vmatprep.mubr.f32.mxu0 0.0
    %1053 = vmatmul.mubr.f32.gmra.mrb[0].mxu0 %v783
    %v1054 = vpop.f32.mrb[0].mxu0
    %v1055 = vadd.f32 %v758, %v1054
    %v1056 = vpop.f32.mrb[0].mxu0
    %1057 = vmatprep.mubr.f32.mxu0 0.0
    %1058 = vmatmul.mubr.f32.gmra.mrb[0].mxu0 %v786
    %v1059 = vpop.f32.mrb[0].mxu0
    %v1060 = vadd.f32 %v758, %v1059
    %v1061 = vpop.f32.mrb[0].mxu0
    %1062 = vmatprep.mubr.f32.mxu0 0.0
    %1063 = vmatmul.mubr.f32.gmra.mrb[0].mxu0 %v789
    %v1064 = vpop.f32.mrb[0].mxu0
    %v1065 = vadd.f32 %v758, %v1064
    %v1066 = vpop.f32.mrb[0].mxu0
    %1067 = vmatprep.mubr.f32.mxu0 0.0
    %1068 = vmatmul.mubr.f32.gmra.mrb[0].mxu0 %v792
    %v1069 = vpop.f32.mrb[0].mxu0
    %v1070 = vadd.f32 %v758, %v1069
    %v1071 = vpop.f32.mrb[0].mxu0
    %1072 = vmatprep.mubr.f32.mxu0 0.0
    %1073 = vmatmul.mubr.f32.gmra.mrb[0].mxu0 %v795
    %v1074 = vpop.f32.mrb[0].mxu0
    %v1075 = vadd.f32 %v758, %v1074
    %v1076 = vpop.f32.mrb[0].mxu0
    %1077 = vmatprep.mubr.f32.mxu0 0.0
    %1078 = vmatmul.mubr.f32.gmra.mrb[0].mxu0 %v798
    %v1079 = vpop.f32.mrb[0].mxu0
    %v1080 = vadd.f32 %v758, %v1079
    %v1081 = vpop.f32.mrb[0].mxu0
    %1082 = vmatprep.mubr.f32.mxu0 0.0
    %1083 = vmatmul.mubr.f32.gmra.mrb[0].mxu0 %v801
    %v1084 = vpop.f32.mrb[0].mxu0
    %v1085 = vadd.f32 %v758, %v1084
    %v1086 = vpop.f32.mrb[0].mxu0
    %1087 = vmatprep.mubr.f32.mxu0 0.0
    %1088 = vmatmul.mubr.f32.gmra.mrb[0].mxu0 %v804
    %v1089 = vpop.f32.mrb[0].mxu0
    %v1090 = vadd.f32 %v758, %v1089
    %v1091 = vpop.f32.mrb[0].mxu0
    %1092 = vmatprep.mubr.f32.mxu0 0.0
    %1093 = vmatmul.mubr.f32.gmra.mrb[0].mxu0 %v807
    %v1094 = vpop.f32.mrb[0].mxu0
    %v1095 = vadd.f32 %v758, %v1094
    %v1096 = vpop.f32.mrb[0].mxu0
    %1097 = vmatprep.mubr.f32.mxu0 0.0
    %1098 = vmatmul.mubr.f32.gmra.mrb[0].mxu0 %v810
    %v1099 = vpop.f32.mrb[0].mxu0
    %v1100 = vadd.f32 %v758, %v1099
    %v1101 = vpop.f32.mrb[0].mxu0
    %1102 = vmatprep.mubr.f32.mxu0 0.0
    %1103 = vmatmul.mubr.f32.gmra.mrb[0].mxu0 %v813
    %v1104 = vpop.f32.mrb[0].mxu0
    %v1105 = vadd.f32 %v758, %v1104
    %v1106 = vpop.f32.mrb[0].mxu0
    %1107 = vmatprep.mubr.f32.mxu0 0.0
    %1108 = vmatmul.mubr.f32.gmra.mrb[0].mxu0 %v816
    %v1109 = vpop.f32.mrb[0].mxu0
    %v1110 = vadd.f32 %v758, %v1109
    %v1111 = vpop.f32.mrb[0].mxu0
    %1112 = vmatprep.mubr.f32.mxu0 0.0
    %1113 = vmatmul.mubr.f32.gmra.mrb[0].mxu0 %v819
    %v1114 = vpop.f32.mrb[0].mxu0
    %v1115 = vadd.f32 %v758, %v1114
    %v1116 = vpop.f32.mrb[0].mxu0
    %1117 = vmatprep.mubr.f32.mxu0 0.0
    %1118 = vmatmul.mubr.f32.gmra.mrb[0].mxu0 %v822
    %v1119 = vpop.f32.mrb[0].mxu0
    %v1120 = vadd.f32 %v758, %v1119
    %v1121 = vpop.f32.mrb[0].mxu0
    %1122 = vmatprep.mubr.f32.mxu0 0.0
    %1123 = vmatmul.mubr.f32.gmra.mrb[0].mxu0 %v825
    %v1124 = vpop.f32.mrb[0].mxu0
    %v1125 = vadd.f32 %v758, %v1124
    %v1126 = vpop.f32.mrb[0].mxu0
    %1127 = vmatprep.mubr.f32.mxu0 0.0
    %1128 = vmatmul.mubr.f32.gmra.mrb[0].mxu0 %v828
    %v1129 = vpop.f32.mrb[0].mxu0
    %v1130 = vadd.f32 %v758, %v1129
    %v1131 = vpop.f32.mrb[0].mxu0
    %1132 = vmatprep.mubr.f32.mxu0 0.0
    %1133 = vmatmul.mubr.f32.gmra.mrb[0].mxu0 %v831
    %v1134 = vpop.f32.mrb[0].mxu0
    %v1135 = vadd.f32 %v758, %v1134
    %v1136 = vpop.f32.mrb[0].mxu0
    %1137 = vmatprep.mubr.f32.mxu0 0.0
    %1138 = vmatmul.mubr.f32.gmra.mrb[0].mxu0 %v834
    %v1139 = vpop.f32.mrb[0].mxu0
    %v1140 = vadd.f32 %v758, %v1139
    %v1141 = vpop.f32.mrb[0].mxu0
    %1142 = vmatprep.mubr.f32.mxu0 0.0
    %1143 = vmatmul.mubr.f32.gmra.mrb[0].mxu0 %v837
    %v1144 = vpop.f32.mrb[0].mxu0
    %v1145 = vadd.f32 %v758, %v1144
    %v1146 = vpop.f32.mrb[0].mxu0
    %1147 = vmatprep.mubr.f32.mxu0 0.0
    %1148 = vmatmul.mubr.f32.gmra.mrb[0].mxu0 %v840
    %v1149 = vpop.f32.mrb[0].mxu0
    %v1150 = vadd.f32 %v758, %v1149
    %v1151 = vpop.f32.mrb[0].mxu0
    %1152 = vmatprep.mubr.f32.mxu0 0.0
    %1153 = vmatmul.mubr.f32.gmra.mrb[0].mxu0 %v843
    %v1154 = vpop.f32.mrb[0].mxu0
    %v1155 = vadd.f32 %v758, %v1154
    %v1156 = vpop.f32.mrb[0].mxu0
    %1157 = vmatprep.mubr.f32.mxu0 0.0
    %1158 = vmatmul.mubr.f32.gmra.mrb[0].mxu0 %v846
    %v1159 = vpop.f32.mrb[0].mxu0
    %v1160 = vadd.f32 %v758, %v1159
    %v1161 = vpop.f32.mrb[0].mxu0
    %1162 = vmatprep.mubr.f32.mxu0 0.0
    %1163 = vmatmul.mubr.f32.gmra.mrb[0].mxu0 %v849
    %v1164 = vpop.f32.mrb[0].mxu0
    %v1165 = vadd.f32 %v758, %v1164
    %v1166 = vpop.f32.mrb[0].mxu0
    %1167 = vmatprep.mubr.f32.mxu0 0.0
    %1168 = vmatmul.mubr.f32.gmra.mrb[0].mxu0 %v852
    %v1169 = vpop.f32.mrb[0].mxu0
    %v1170 = vadd.f32 %v758, %v1169
    %v1171 = vpop.f32.mrb[0].mxu0
    %1172 = vmatprep.mubr.f32.mxu0 0.0
    %1173 = vmatmul.mubr.f32.gmra.mrb[0].mxu0 %v855
    %v1174 = vpop.f32.mrb[0].mxu0
    %v1175 = vadd.f32 %v758, %v1174
    %v1176 = vpop.f32.mrb[0].mxu0
    %1177 = vmatprep.mubr.f32.mxu0 0.0
    %1178 = vmatmul.mubr.f32.gmra.mrb[0].mxu0 %v858
    %v1179 = vpop.f32.mrb[0].mxu0
    %v1180 = vadd.f32 %v758, %v1179
    %v1181 = vpop.f32.mrb[0].mxu0
    %1182 = vmatprep.mubr.f32.mxu0 0.0
    %1183 = vmatmul.mubr.f32.gmra.mrb[0].mxu0 %v861
    %v1184 = vpop.f32.mrb[0].mxu0
    %v1185 = vadd.f32 %v758, %v1184
    %v1186 = vpop.f32.mrb[0].mxu0
    %1187 = vmatprep.mubr.f32.mxu0 0.0
    %1188 = vmatmul.mubr.f32.gmra.mrb[0].mxu0 %v864
    %v1189 = vpop.f32.mrb[0].mxu0
    %v1190 = vadd.f32 %v758, %v1189
    %v1191 = vpop.f32.mrb[0].mxu0
    %1192 = vmatprep.mubr.f32.mxu0 0.0
    %1193 = vmatmul.mubr.f32.gmra.mrb[0].mxu0 %v867
    %v1194 = vpop.f32.mrb[0].mxu0
    %v1195 = vadd.f32 %v758, %v1194
    %v1196 = vpop.f32.mrb[0].mxu0
    %1197 = vmatprep.mubr.f32.mxu0 0.0
    %1198 = vmatmul.mubr.f32.gmra.mrb[0].mxu0 %v870
    %v1199 = vpop.f32.mrb[0].mxu0
    %v1200 = vadd.f32 %v758, %v1199
    %v1201 = vpop.f32.mrb[0].mxu0
    %1202 = vmatprep.mubr.f32.mxu0 0.0
    %1203 = vmatmul.mubr.f32.gmra.mrb[0].mxu0 %v873
    %v1204 = vpop.f32.mrb[0].mxu0
    %v1205 = vadd.f32 %v758, %v1204
    %v1206 = vpop.f32.mrb[0].mxu0
    %1207 = vmatprep.mubr.f32.mxu0 0.0
    %1208 = vmatmul.mubr.f32.gmra.mrb[0].mxu0 %v876
    %v1209 = vpop.f32.mrb[0].mxu0
    %v1210 = vadd.f32 %v758, %v1209
    %v1211 = vpop.f32.mrb[0].mxu0
    %1212 = vmatprep.mubr.f32.mxu0 0.0
    %1213 = vmatmul.mubr.f32.gmra.mrb[0].mxu0 %v879
    %v1214 = vpop.f32.mrb[0].mxu0
    %v1215 = vadd.f32 %v758, %v1214
    %v1216 = vpop.f32.mrb[0].mxu0
    %1217 = vmatprep.mubr.f32.mxu0 0.0
    %1218 = vmatmul.mubr.f32.gmra.mrb[0].mxu0 %v882
    %v1219 = vpop.f32.mrb[0].mxu0
    %v1220 = vadd.f32 %v758, %v1219
    %v1221 = vpop.f32.mrb[0].mxu0
    %1222 = vmatprep.mubr.f32.mxu0 0.0
    %1223 = vmatmul.mubr.f32.gmra.mrb[0].mxu0 %v885
    %v1224 = vpop.f32.mrb[0].mxu0
    %v1225 = vadd.f32 %v758, %v1224
    %v1226 = vpop.f32.mrb[0].mxu0
    %1227 = vmatprep.mubr.f32.mxu0 0.0
    %1228 = vmatmul.mubr.f32.gmra.mrb[0].mxu0 %v888
    %v1229 = vpop.f32.mrb[0].mxu0
    %v1230 = vadd.f32 %v758, %v1229
    %v1231 = vpop.f32.mrb[0].mxu0
    %1232 = vmatprep.mubr.f32.mxu0 0.0
    %1233 = vmatmul.mubr.f32.gmra.mrb[0].mxu0 %v891
    %v1234 = vpop.f32.mrb[0].mxu0
    %v1235 = vadd.f32 %v758, %v1234
    %v1236 = vpop.f32.mrb[0].mxu0
    %1237 = vmatprep.mubr.f32.mxu0 0.0
    %1238 = vmatmul.mubr.f32.gmra.mrb[0].mxu0 %v894
    %v1239 = vpop.f32.mrb[0].mxu0
    %v1240 = vadd.f32 %v758, %v1239
    %v1241 = vpop.f32.mrb[0].mxu0
    %1242 = vmatprep.mubr.f32.mxu0 0.0
    %1243 = vmatmul.mubr.f32.gmra.mrb[0].mxu0 %v897
    %v1244 = vpop.f32.mrb[0].mxu0
    %v1245 = vadd.f32 %v758, %v1244
    %v1246 = vpop.f32.mrb[0].mxu0
    %1247 = vmatprep.mubr.f32.mxu0 0.0
    %1248 = vmatmul.mubr.f32.gmra.mrb[0].mxu0 %v900
    %v1249 = vpop.f32.mrb[0].mxu0
    %v1250 = vadd.f32 %v758, %v1249
    %v1251 = vpop.f32.mrb[0].mxu0
    %1252 = vmatprep.mubr.f32.mxu0 0.0
    %1253 = vmatmul.mubr.f32.gmra.mrb[0].mxu0 %v903
    %v1254 = vpop.f32.mrb[0].mxu0
    %v1255 = vadd.f32 %v758, %v1254
    %v1256 = vpop.f32.mrb[0].mxu0
    %1257 = vmatprep.mubr.f32.mxu0 0.0
    %1258 = vmatmul.mubr.f32.gmra.mrb[0].mxu0 %v906
    %v1259 = vpop.f32.mrb[0].mxu0
    %v1260 = vadd.f32 %v758, %v1259
    %v1261 = vpop.f32.mrb[0].mxu0
    %1262 = vmatprep.mubr.f32.mxu0 0.0
    %1263 = vmatmul.mubr.f32.gmra.mrb[0].mxu0 %v909
    %v1264 = vpop.f32.mrb[0].mxu0
    %v1265 = vadd.f32 %v758, %v1264
    %v1266 = vpop.f32.mrb[0].mxu0
    %1267 = vmatprep.mubr.f32.mxu0 0.0
    %1268 = vmatmul.mubr.f32.gmra.mrb[0].mxu0 %v912
    %v1269 = vpop.f32.mrb[0].mxu0
    %v1270 = vadd.f32 %v758, %v1269
    %v1271 = vpop.f32.mrb[0].mxu0
    %1272 = vmatprep.mubr.f32.mxu0 0.0
    %1273 = vmatmul.mubr.f32.gmra.mrb[0].mxu0 %v915
    %v1274 = vpop.f32.mrb[0].mxu0
    %v1275 = vadd.f32 %v758, %v1274
    %v1276 = vpop.f32.mrb[0].mxu0
    %1277 = vmatprep.mubr.f32.mxu0 0.0
    %1278 = vmatmul.mubr.f32.gmra.mrb[0].mxu0 %v918
    %v1279 = vpop.f32.mrb[0].mxu0
    %v1280 = vadd.f32 %v758, %v1279
    %v1281 = vpop.f32.mrb[0].mxu0
    %1282 = vmatprep.mubr.f32.mxu0 0.0
    %1283 = vmatmul.mubr.f32.gmra.mrb[0].mxu0 %v921
    %v1284 = vpop.f32.mrb[0].mxu0
    %v1285 = vadd.f32 %v758, %v1284
    %v1286 = vpop.f32.mrb[0].mxu0
    %1287 = vmatprep.mubr.f32.mxu0 0.0
    %1288 = vmatmul.mubr.f32.gmra.mrb[0].mxu0 %v924
    %v1289 = vpop.f32.mrb[0].mxu0
    %v1290 = vadd.f32 %v758, %v1289
    %v1291 = vpop.f32.mrb[0].mxu0
    %1292 = vmatprep.mubr.f32.mxu0 0.0
    %1293 = vmatmul.mubr.f32.gmra.mrb[0].mxu0 %v927
    %v1294 = vpop.f32.mrb[0].mxu0
    %v1295 = vadd.f32 %v758, %v1294
    %v1296 = vpop.f32.mrb[0].mxu0
    %1297 = vmatprep.mubr.f32.mxu0 0.0
    %1298 = vmatmul.mubr.f32.gmra.mrb[0].mxu0 %v930
    %v1299 = vpop.f32.mrb[0].mxu0
    %v1300 = vadd.f32 %v758, %v1299
    %v1301 = vpop.f32.mrb[0].mxu0
    %1302 = vmatprep.mubr.f32.mxu0 0.0
    %1303 = vmatmul.mubr.f32.gmra.mrb[0].mxu0 %v933
    %v1304 = vpop.f32.mrb[0].mxu0
    %v1305 = vadd.f32 %v758, %v1304
    %v1306 = vpop.f32.mrb[0].mxu0
    %1307 = vmatprep.mubr.f32.mxu0 0.0
    %1308 = vmatmul.mubr.f32.gmra.mrb[0].mxu0 %v936
    %v1309 = vpop.f32.mrb[0].mxu0
    %v1310 = vadd.f32 %v758, %v1309
    %v1311 = vpop.f32.mrb[0].mxu0
    %1312 = vmatprep.mubr.f32.mxu0 0.0
    %1313 = vmatmul.mubr.f32.gmra.mrb[0].mxu0 %v939
    %v1314 = vpop.f32.mrb[0].mxu0
    %v1315 = vadd.f32 %v758, %v1314
    %v1316 = vpop.f32.mrb[0].mxu0
    %1317 = vmatprep.mubr.f32.mxu0 0.0
    %1318 = vmatmul.mubr.f32.gmra.mrb[0].mxu0 %v942
    %v1319 = vpop.f32.mrb[0].mxu0
    %v1320 = vadd.f32 %v758, %v1319
    %v1321 = vpop.f32.mrb[0].mxu0
    %1322 = vmatprep.mubr.f32.mxu0 0.0
    %1323 = vmatmul.mubr.f32.gmra.mrb[0].mxu0 %v945
    %v1324 = vpop.f32.mrb[0].mxu0
    %v1325 = vadd.f32 %v758, %v1324
    %v1326 = vpop.f32.mrb[0].mxu0
    %1327 = vmatprep.mubr.f32.mxu0 0.0
    %1328 = vmatmul.mubr.f32.gmra.mrb[0].mxu0 %v948
    %v1329 = vpop.f32.mrb[0].mxu0
    %v1330 = vadd.f32 %v758, %v1329
    %v1331 = vpop.f32.mrb[0].mxu0
    %1332 = vmatprep.mubr.f32.mxu0 0.0
    %1333 = vmatmul.mubr.f32.gmra.mrb[0].mxu0 %v951
    %v1334 = vpop.f32.mrb[0].mxu0
    %v1335 = vadd.f32 %v758, %v1334
    %v1336 = vpop.f32.mrb[0].mxu0
    %1337 = vdwg.mxu0
    %v1338 = vmax.f32 %v1020, 0.0
    %v1339 = vmax.f32 %v1025, 0.0
    %v1340 = vmax.f32 %v1030, 0.0
    %v1341 = vmax.f32 %v1035, 0.0
    %v1342 = vmax.f32 %v1040, 0.0
    %v1343 = vmax.f32 %v1045, 0.0
    %v1344 = vmax.f32 %v1050, 0.0
    %v1345 = vmax.f32 %v1055, 0.0
    %v1346 = vmax.f32 %v1060, 0.0
    %v1347 = vmax.f32 %v1065, 0.0
    %v1348 = vmax.f32 %v1070, 0.0
    %v1349 = vmax.f32 %v1075, 0.0
    %v1350 = vmax.f32 %v1080, 0.0
    %v1351 = vmax.f32 %v1085, 0.0
    %v1352 = vmax.f32 %v1090, 0.0
    %v1353 = vmax.f32 %v1095, 0.0
    %v1354 = vmax.f32 %v1100, 0.0
    %v1355 = vmax.f32 %v1105, 0.0
    %v1356 = vmax.f32 %v1110, 0.0
    %v1357 = vmax.f32 %v1115, 0.0
    %v1358 = vmax.f32 %v1120, 0.0
    %v1359 = vmax.f32 %v1125, 0.0
    %v1360 = vmax.f32 %v1130, 0.0
    %v1361 = vmax.f32 %v1135, 0.0
    %v1362 = vmax.f32 %v1140, 0.0
    %v1363 = vmax.f32 %v1145, 0.0
    %v1364 = vmax.f32 %v1150, 0.0
    %v1365 = vmax.f32 %v1155, 0.0
    %v1366 = vmax.f32 %v1160, 0.0
    %v1367 = vmax.f32 %v1165, 0.0
    %v1368 = vmax.f32 %v1170, 0.0
    %v1369 = vmax.f32 %v1175, 0.0
    %v1370 = vmax.f32 %v1180, 0.0
    %v1371 = vmax.f32 %v1185, 0.0
    %v1372 = vmax.f32 %v1190, 0.0
    %v1373 = vmax.f32 %v1195, 0.0
    %v1374 = vmax.f32 %v1200, 0.0
    %v1375 = vmax.f32 %v1205, 0.0
    %v1376 = vmax.f32 %v1210, 0.0
    %v1377 = vmax.f32 %v1215, 0.0
    %v1378 = vmax.f32 %v1220, 0.0
    %v1379 = vmax.f32 %v1225, 0.0
    %v1380 = vmax.f32 %v1230, 0.0
    %v1381 = vmax.f32 %v1235, 0.0
    %v1382 = vmax.f32 %v1240, 0.0
    %v1383 = vmax.f32 %v1245, 0.0
    %v1384 = vmax.f32 %v1250, 0.0
    %v1385 = vmax.f32 %v1255, 0.0
    %v1386 = vmax.f32 %v1260, 0.0
    %v1387 = vmax.f32 %v1265, 0.0
    %v1388 = vmax.f32 %v1270, 0.0
    %v1389 = vmax.f32 %v1275, 0.0
    %v1390 = vmax.f32 %v1280, 0.0
    %v1391 = vmax.f32 %v1285, 0.0
    %v1392 = vmax.f32 %v1290, 0.0
    %v1393 = vmax.f32 %v1295, 0.0
    %v1394 = vmax.f32 %v1300, 0.0
    %v1395 = vmax.f32 %v1305, 0.0
    %v1396 = vmax.f32 %v1310, 0.0
    %v1397 = vmax.f32 %v1315, 0.0
    %v1398 = vmax.f32 %v1320, 0.0
    %v1399 = vmax.f32 %v1325, 0.0
    %v1400 = vmax.f32 %v1330, 0.0
    %v1401 = vmax.f32 %v1335, 0.0
    %v1402 = vld [vmem:[%s5] sm:$0xff]
    %v1403 = vld [vmem:[%s5 + $0x8] sm:$0xff]
    %v1404 = vld [vmem:[%s5 + $0x10] sm:$0xff]
    %v1405 = vld [vmem:[%s5 + $0x18] sm:$0xff]
    %v1406 = vld [vmem:[%s5 + $0x20] sm:$0xff]
    %v1407 = vld [vmem:[%s5 + $0x28] sm:$0xff]
    %v1408 = vld [vmem:[%s5 + $0x30] sm:$0xff]
    %v1409 = vld [vmem:[%s5 + $0x38] sm:$0xff]
    %v1410 = vld [vmem:[%s5 + $0x40] sm:$0xff]
    %v1411 = vld [vmem:[%s5 + $0x48] sm:$0xff]
    %v1412 = vld [vmem:[%s5 + $0x50] sm:$0xff]
    %v1413 = vld [vmem:[%s5 + $0x58] sm:$0xff]
    %v1414 = vld [vmem:[%s5 + $0x60] sm:$0xff]
    %v1415 = vld [vmem:[%s5 + $0x68] sm:$0xff]
    %v1416 = vld [vmem:[%s5 + $0x70] sm:$0xff]
    %v1417 = vld [vmem:[%s5 + $0x78] sm:$0xff]
    %v1418 = vld [vmem:[%s5 + $0x80] sm:$0xff]
    %v1419 = vld [vmem:[%s5 + $0x88] sm:$0xff]
    %v1420 = vld [vmem:[%s5 + $0x90] sm:$0xff]
    %v1421 = vld [vmem:[%s5 + $0x98] sm:$0xff]
    %v1422 = vld [vmem:[%s5 + $0xa0] sm:$0xff]
    %v1423 = vld [vmem:[%s5 + $0xa8] sm:$0xff]
    %v1424 = vld [vmem:[%s5 + $0xb0] sm:$0xff]
    %v1425 = vld [vmem:[%s5 + $0xb8] sm:$0xff]
    %v1426 = vld [vmem:[%s5 + $0xc0] sm:$0xff]
    %v1427 = vld [vmem:[%s5 + $0xc8] sm:$0xff]
    %v1428 = vld [vmem:[%s5 + $0xd0] sm:$0xff]
    %v1429 = vld [vmem:[%s5 + $0xd8] sm:$0xff]
    %v1430 = vld [vmem:[%s5 + $0xe0] sm:$0xff]
    %v1431 = vld [vmem:[%s5 + $0xe8] sm:$0xff]
    %v1432 = vld [vmem:[%s5 + $0xf0] sm:$0xff]
    %v1433 = vld [vmem:[%s5 + $0xf8] sm:$0xff]
    %v1434 = vld [vmem:[%s6] sm:$0x3]
    %v1436 = vlaneseq
    %v1437 = vshrl.u32 %v1436, 7
    %v1438 = vsub.s32 0, %v1437
    %v1439 = vrot.slane %v1434, %v1438
    %v1440 = vlaneseq
    %v1441 = vshrl.u32 %v1440, 7
    %v1442 = vsub.s32 1, %v1441
    %v1443 = vrot.slane %v1434, %v1442
    %1446 = vmatprep.subr.mxu0 %v1403
    %1447 = vmatpush1.msra.mxu0 %v1402
    %1448 = vmatprep.subr.mxu0 %v1405
    %1449 = vmatpush1.msra.mxu0 %v1404
    %1450 = vmatprep.subr.mxu0 %v1407
    %1451 = vmatpush1.msra.mxu0 %v1406
    %1452 = vmatprep.subr.mxu0 %v1409
    %1453 = vmatpush1.msra.mxu0 %v1408
    %1454 = vmatprep.subr.mxu0 %v1411
    %1455 = vmatpush1.msra.mxu0 %v1410
    %1456 = vmatprep.subr.mxu0 %v1413
    %1457 = vmatpush1.msra.mxu0 %v1412
    %1458 = vmatprep.subr.mxu0 %v1415
    %1459 = vmatpush1.msra.mxu0 %v1414
    %1460 = vmatprep.subr.mxu0 %v1417
    %1461 = vmatpush1.msra.mxu0 %v1416
    %1462 = vmatprep.subr.mxu0 %v1419
    %1463 = vmatpush1.msra.mxu0 %v1418
    %1464 = vmatprep.subr.mxu0 %v1421
    %1465 = vmatpush1.msra.mxu0 %v1420
    %1466 = vmatprep.subr.mxu0 %v1423
    %1467 = vmatpush1.msra.mxu0 %v1422
    %1468 = vmatprep.subr.mxu0 %v1425
    %1469 = vmatpush1.msra.mxu0 %v1424
    %1470 = vmatprep.subr.mxu0 %v1427
    %1471 = vmatpush1.msra.mxu0 %v1426
    %1472 = vmatprep.subr.mxu0 %v1429
    %1473 = vmatpush1.msra.mxu0 %v1428
    %1474 = vmatprep.subr.mxu0 %v1431
    %1475 = vmatpush1.msra.mxu0 %v1430
    %1476 = vmatprep.subr.mxu0 %v1433
    %1477 = vmatpush1.msra.mxu0 %v1432
    %1478 = vmatprep.subr.mxu0 0.0
    %1479 = vmatpush1.msra.mxu0 0.0
    %1480 = vmatprep.subr.mxu0 0.0
    %1481 = vmatpush1.msra.mxu0 0.0
    %1482 = vmatprep.subr.mxu0 0.0
    %1483 = vmatpush1.msra.mxu0 0.0
    %1484 = vmatprep.subr.mxu0 0.0
    %1485 = vmatpush1.msra.mxu0 0.0
    %1486 = vmatprep.subr.mxu0 0.0
    %1487 = vmatpush1.msra.mxu0 0.0
    %1488 = vmatprep.subr.mxu0 0.0
    %1489 = vmatpush1.msra.mxu0 0.0
    %1490 = vmatprep.subr.mxu0 0.0
    %1491 = vmatpush1.msra.mxu0 0.0
    %1492 = vmatprep.subr.mxu0 0.0
    %1493 = vmatpush1.msra.mxu0 0.0
    %1494 = vmatprep.subr.mxu0 0.0
    %1495 = vmatpush1.msra.mxu0 0.0
    %1496 = vmatprep.subr.mxu0 0.0
    %1497 = vmatpush1.msra.mxu0 0.0
    %1498 = vmatprep.subr.mxu0 0.0
    %1499 = vmatpush1.msra.mxu0 0.0
    %1500 = vmatprep.subr.mxu0 0.0
    %1501 = vmatpush1.msra.mxu0 0.0
    %1502 = vmatprep.subr.mxu0 0.0
    %1503 = vmatpush1.msra.mxu0 0.0
    %1504 = vmatprep.subr.mxu0 0.0
    %1505 = vmatpush1.msra.mxu0 0.0
    %1506 = vmatprep.subr.mxu0 0.0
    %1507 = vmatpush1.msra.mxu0 0.0
    %1508 = vmatprep.subr.mxu0 0.0
    %1509 = vmatpush1.msra.mxu0 0.0
    %1510 = vmatprep.mubr.f32.mxu0 0.0
    %1511 = vmatmul.mubr.f32.gmra.mrb[0].mxu0 %v1338
    %v1512 = vpop.f32.mrb[0].mxu0
    %v1513 = vadd.f32 %v1439, %v1512
    %v1514 = vpop.f32.mrb[0].mxu0
    %v1515 = vadd.f32 %v1443, %v1514
    %1516 = vmatprep.mubr.f32.mxu0 0.0
    %1517 = vmatmul.mubr.f32.gmra.mrb[0].mxu0 %v1339
    %v1518 = vpop.f32.mrb[0].mxu0
    %v1519 = vadd.f32 %v1439, %v1518
    %v1520 = vpop.f32.mrb[0].mxu0
    %v1521 = vadd.f32 %v1443, %v1520
    %1522 = vmatprep.mubr.f32.mxu0 0.0
    %1523 = vmatmul.mubr.f32.gmra.mrb[0].mxu0 %v1340
    %v1524 = vpop.f32.mrb[0].mxu0
    %v1525 = vadd.f32 %v1439, %v1524
    %v1526 = vpop.f32.mrb[0].mxu0
    %v1527 = vadd.f32 %v1443, %v1526
    %1528 = vmatprep.mubr.f32.mxu0 0.0
    %1529 = vmatmul.mubr.f32.gmra.mrb[0].mxu0 %v1341
    %v1530 = vpop.f32.mrb[0].mxu0
    %v1531 = vadd.f32 %v1439, %v1530
    %v1532 = vpop.f32.mrb[0].mxu0
    %v1533 = vadd.f32 %v1443, %v1532
    %1534 = vmatprep.mubr.f32.mxu0 0.0
    %1535 = vmatmul.mubr.f32.gmra.mrb[0].mxu0 %v1342
    %v1536 = vpop.f32.mrb[0].mxu0
    %v1537 = vadd.f32 %v1439, %v1536
    %v1538 = vpop.f32.mrb[0].mxu0
    %v1539 = vadd.f32 %v1443, %v1538
    %1540 = vmatprep.mubr.f32.mxu0 0.0
    %1541 = vmatmul.mubr.f32.gmra.mrb[0].mxu0 %v1343
    %v1542 = vpop.f32.mrb[0].mxu0
    %v1543 = vadd.f32 %v1439, %v1542
    %v1544 = vpop.f32.mrb[0].mxu0
    %v1545 = vadd.f32 %v1443, %v1544
    %1546 = vmatprep.mubr.f32.mxu0 0.0
    %1547 = vmatmul.mubr.f32.gmra.mrb[0].mxu0 %v1344
    %v1548 = vpop.f32.mrb[0].mxu0
    %v1549 = vadd.f32 %v1439, %v1548
    %v1550 = vpop.f32.mrb[0].mxu0
    %v1551 = vadd.f32 %v1443, %v1550
    %1552 = vmatprep.mubr.f32.mxu0 0.0
    %1553 = vmatmul.mubr.f32.gmra.mrb[0].mxu0 %v1345
    %v1554 = vpop.f32.mrb[0].mxu0
    %v1555 = vadd.f32 %v1439, %v1554
    %v1556 = vpop.f32.mrb[0].mxu0
    %v1557 = vadd.f32 %v1443, %v1556
    %1558 = vmatprep.mubr.f32.mxu0 0.0
    %1559 = vmatmul.mubr.f32.gmra.mrb[0].mxu0 %v1346
    %v1560 = vpop.f32.mrb[0].mxu0
    %v1561 = vadd.f32 %v1439, %v1560
    %v1562 = vpop.f32.mrb[0].mxu0
    %v1563 = vadd.f32 %v1443, %v1562
    %1564 = vmatprep.mubr.f32.mxu0 0.0
    %1565 = vmatmul.mubr.f32.gmra.mrb[0].mxu0 %v1347
    %v1566 = vpop.f32.mrb[0].mxu0
    %v1567 = vadd.f32 %v1439, %v1566
    %v1568 = vpop.f32.mrb[0].mxu0
    %v1569 = vadd.f32 %v1443, %v1568
    %1570 = vmatprep.mubr.f32.mxu0 0.0
    %1571 = vmatmul.mubr.f32.gmra.mrb[0].mxu0 %v1348
    %v1572 = vpop.f32.mrb[0].mxu0
    %v1573 = vadd.f32 %v1439, %v1572
    %v1574 = vpop.f32.mrb[0].mxu0
    %v1575 = vadd.f32 %v1443, %v1574
    %1576 = vmatprep.mubr.f32.mxu0 0.0
    %1577 = vmatmul.mubr.f32.gmra.mrb[0].mxu0 %v1349
    %v1578 = vpop.f32.mrb[0].mxu0
    %v1579 = vadd.f32 %v1439, %v1578
    %v1580 = vpop.f32.mrb[0].mxu0
    %v1581 = vadd.f32 %v1443, %v1580
    %1582 = vmatprep.mubr.f32.mxu0 0.0
    %1583 = vmatmul.mubr.f32.gmra.mrb[0].mxu0 %v1350
    %v1584 = vpop.f32.mrb[0].mxu0
    %v1585 = vadd.f32 %v1439, %v1584
    %v1586 = vpop.f32.mrb[0].mxu0
    %v1587 = vadd.f32 %v1443, %v1586
    %1588 = vmatprep.mubr.f32.mxu0 0.0
    %1589 = vmatmul.mubr.f32.gmra.mrb[0].mxu0 %v1351
    %v1590 = vpop.f32.mrb[0].mxu0
    %v1591 = vadd.f32 %v1439, %v1590
    %v1592 = vpop.f32.mrb[0].mxu0
    %v1593 = vadd.f32 %v1443, %v1592
    %1594 = vmatprep.mubr.f32.mxu0 0.0
    %1595 = vmatmul.mubr.f32.gmra.mrb[0].mxu0 %v1352
    %v1596 = vpop.f32.mrb[0].mxu0
    %v1597 = vadd.f32 %v1439, %v1596
    %v1598 = vpop.f32.mrb[0].mxu0
    %v1599 = vadd.f32 %v1443, %v1598
    %1600 = vmatprep.mubr.f32.mxu0 0.0
    %1601 = vmatmul.mubr.f32.gmra.mrb[0].mxu0 %v1353
    %v1602 = vpop.f32.mrb[0].mxu0
    %v1603 = vadd.f32 %v1439, %v1602
    %v1604 = vpop.f32.mrb[0].mxu0
    %v1605 = vadd.f32 %v1443, %v1604
    %1606 = vmatprep.mubr.f32.mxu0 0.0
    %1607 = vmatmul.mubr.f32.gmra.mrb[0].mxu0 %v1354
    %v1608 = vpop.f32.mrb[0].mxu0
    %v1609 = vadd.f32 %v1439, %v1608
    %v1610 = vpop.f32.mrb[0].mxu0
    %v1611 = vadd.f32 %v1443, %v1610
    %1612 = vmatprep.mubr.f32.mxu0 0.0
    %1613 = vmatmul.mubr.f32.gmra.mrb[0].mxu0 %v1355
    %v1614 = vpop.f32.mrb[0].mxu0
    %v1615 = vadd.f32 %v1439, %v1614
    %v1616 = vpop.f32.mrb[0].mxu0
    %v1617 = vadd.f32 %v1443, %v1616
    %1618 = vmatprep.mubr.f32.mxu0 0.0
    %1619 = vmatmul.mubr.f32.gmra.mrb[0].mxu0 %v1356
    %v1620 = vpop.f32.mrb[0].mxu0
    %v1621 = vadd.f32 %v1439, %v1620
    %v1622 = vpop.f32.mrb[0].mxu0
    %v1623 = vadd.f32 %v1443, %v1622
    %1624 = vmatprep.mubr.f32.mxu0 0.0
    %1625 = vmatmul.mubr.f32.gmra.mrb[0].mxu0 %v1357
    %v1626 = vpop.f32.mrb[0].mxu0
    %v1627 = vadd.f32 %v1439, %v1626
    %v1628 = vpop.f32.mrb[0].mxu0
    %v1629 = vadd.f32 %v1443, %v1628
    %1630 = vmatprep.mubr.f32.mxu0 0.0
    %1631 = vmatmul.mubr.f32.gmra.mrb[0].mxu0 %v1358
    %v1632 = vpop.f32.mrb[0].mxu0
    %v1633 = vadd.f32 %v1439, %v1632
    %v1634 = vpop.f32.mrb[0].mxu0
    %v1635 = vadd.f32 %v1443, %v1634
    %1636 = vmatprep.mubr.f32.mxu0 0.0
    %1637 = vmatmul.mubr.f32.gmra.mrb[0].mxu0 %v1359
    %v1638 = vpop.f32.mrb[0].mxu0
    %v1639 = vadd.f32 %v1439, %v1638
    %v1640 = vpop.f32.mrb[0].mxu0
    %v1641 = vadd.f32 %v1443, %v1640
    %1642 = vmatprep.mubr.f32.mxu0 0.0
    %1643 = vmatmul.mubr.f32.gmra.mrb[0].mxu0 %v1360
    %v1644 = vpop.f32.mrb[0].mxu0
    %v1645 = vadd.f32 %v1439, %v1644
    %v1646 = vpop.f32.mrb[0].mxu0
    %v1647 = vadd.f32 %v1443, %v1646
    %1648 = vmatprep.mubr.f32.mxu0 0.0
    %1649 = vmatmul.mubr.f32.gmra.mrb[0].mxu0 %v1361
    %v1650 = vpop.f32.mrb[0].mxu0
    %v1651 = vadd.f32 %v1439, %v1650
    %v1652 = vpop.f32.mrb[0].mxu0
    %v1653 = vadd.f32 %v1443, %v1652
    %1654 = vmatprep.mubr.f32.mxu0 0.0
    %1655 = vmatmul.mubr.f32.gmra.mrb[0].mxu0 %v1362
    %v1656 = vpop.f32.mrb[0].mxu0
    %v1657 = vadd.f32 %v1439, %v1656
    %v1658 = vpop.f32.mrb[0].mxu0
    %v1659 = vadd.f32 %v1443, %v1658
    %1660 = vmatprep.mubr.f32.mxu0 0.0
    %1661 = vmatmul.mubr.f32.gmra.mrb[0].mxu0 %v1363
    %v1662 = vpop.f32.mrb[0].mxu0
    %v1663 = vadd.f32 %v1439, %v1662
    %v1664 = vpop.f32.mrb[0].mxu0
    %v1665 = vadd.f32 %v1443, %v1664
    %1666 = vmatprep.mubr.f32.mxu0 0.0
    %1667 = vmatmul.mubr.f32.gmra.mrb[0].mxu0 %v1364
    %v1668 = vpop.f32.mrb[0].mxu0
    %v1669 = vadd.f32 %v1439, %v1668
    %v1670 = vpop.f32.mrb[0].mxu0
    %v1671 = vadd.f32 %v1443, %v1670
    %1672 = vmatprep.mubr.f32.mxu0 0.0
    %1673 = vmatmul.mubr.f32.gmra.mrb[0].mxu0 %v1365
    %v1674 = vpop.f32.mrb[0].mxu0
    %v1675 = vadd.f32 %v1439, %v1674
    %v1676 = vpop.f32.mrb[0].mxu0
    %v1677 = vadd.f32 %v1443, %v1676
    %1678 = vmatprep.mubr.f32.mxu0 0.0
    %1679 = vmatmul.mubr.f32.gmra.mrb[0].mxu0 %v1366
    %v1680 = vpop.f32.mrb[0].mxu0
    %v1681 = vadd.f32 %v1439, %v1680
    %v1682 = vpop.f32.mrb[0].mxu0
    %v1683 = vadd.f32 %v1443, %v1682
    %1684 = vmatprep.mubr.f32.mxu0 0.0
    %1685 = vmatmul.mubr.f32.gmra.mrb[0].mxu0 %v1367
    %v1686 = vpop.f32.mrb[0].mxu0
    %v1687 = vadd.f32 %v1439, %v1686
    %v1688 = vpop.f32.mrb[0].mxu0
    %v1689 = vadd.f32 %v1443, %v1688
    %1690 = vmatprep.mubr.f32.mxu0 0.0
    %1691 = vmatmul.mubr.f32.gmra.mrb[0].mxu0 %v1368
    %v1692 = vpop.f32.mrb[0].mxu0
    %v1693 = vadd.f32 %v1439, %v1692
    %v1694 = vpop.f32.mrb[0].mxu0
    %v1695 = vadd.f32 %v1443, %v1694
    %1696 = vmatprep.mubr.f32.mxu0 0.0
    %1697 = vmatmul.mubr.f32.gmra.mrb[0].mxu0 %v1369
    %v1698 = vpop.f32.mrb[0].mxu0
    %v1699 = vadd.f32 %v1439, %v1698
    %v1700 = vpop.f32.mrb[0].mxu0
    %v1701 = vadd.f32 %v1443, %v1700
    %1702 = vmatprep.mubr.f32.mxu0 0.0
    %1703 = vmatmul.mubr.f32.gmra.mrb[0].mxu0 %v1370
    %v1704 = vpop.f32.mrb[0].mxu0
    %v1705 = vadd.f32 %v1439, %v1704
    %v1706 = vpop.f32.mrb[0].mxu0
    %v1707 = vadd.f32 %v1443, %v1706
    %1708 = vmatprep.mubr.f32.mxu0 0.0
    %1709 = vmatmul.mubr.f32.gmra.mrb[0].mxu0 %v1371
    %v1710 = vpop.f32.mrb[0].mxu0
    %v1711 = vadd.f32 %v1439, %v1710
    %v1712 = vpop.f32.mrb[0].mxu0
    %v1713 = vadd.f32 %v1443, %v1712
    %1714 = vmatprep.mubr.f32.mxu0 0.0
    %1715 = vmatmul.mubr.f32.gmra.mrb[0].mxu0 %v1372
    %v1716 = vpop.f32.mrb[0].mxu0
    %v1717 = vadd.f32 %v1439, %v1716
    %v1718 = vpop.f32.mrb[0].mxu0
    %v1719 = vadd.f32 %v1443, %v1718
    %1720 = vmatprep.mubr.f32.mxu0 0.0
    %1721 = vmatmul.mubr.f32.gmra.mrb[0].mxu0 %v1373
    %v1722 = vpop.f32.mrb[0].mxu0
    %v1723 = vadd.f32 %v1439, %v1722
    %v1724 = vpop.f32.mrb[0].mxu0
    %v1725 = vadd.f32 %v1443, %v1724
    %1726 = vmatprep.mubr.f32.mxu0 0.0
    %1727 = vmatmul.mubr.f32.gmra.mrb[0].mxu0 %v1374
    %v1728 = vpop.f32.mrb[0].mxu0
    %v1729 = vadd.f32 %v1439, %v1728
    %v1730 = vpop.f32.mrb[0].mxu0
    %v1731 = vadd.f32 %v1443, %v1730
    %1732 = vmatprep.mubr.f32.mxu0 0.0
    %1733 = vmatmul.mubr.f32.gmra.mrb[0].mxu0 %v1375
    %v1734 = vpop.f32.mrb[0].mxu0
    %v1735 = vadd.f32 %v1439, %v1734
    %v1736 = vpop.f32.mrb[0].mxu0
    %v1737 = vadd.f32 %v1443, %v1736
    %1738 = vmatprep.mubr.f32.mxu0 0.0
    %1739 = vmatmul.mubr.f32.gmra.mrb[0].mxu0 %v1376
    %v1740 = vpop.f32.mrb[0].mxu0
    %v1741 = vadd.f32 %v1439, %v1740
    %v1742 = vpop.f32.mrb[0].mxu0
    %v1743 = vadd.f32 %v1443, %v1742
    %1744 = vmatprep.mubr.f32.mxu0 0.0
    %1745 = vmatmul.mubr.f32.gmra.mrb[0].mxu0 %v1377
    %v1746 = vpop.f32.mrb[0].mxu0
    %v1747 = vadd.f32 %v1439, %v1746
    %v1748 = vpop.f32.mrb[0].mxu0
    %v1749 = vadd.f32 %v1443, %v1748
    %1750 = vmatprep.mubr.f32.mxu0 0.0
    %1751 = vmatmul.mubr.f32.gmra.mrb[0].mxu0 %v1378
    %v1752 = vpop.f32.mrb[0].mxu0
    %v1753 = vadd.f32 %v1439, %v1752
    %v1754 = vpop.f32.mrb[0].mxu0
    %v1755 = vadd.f32 %v1443, %v1754
    %1756 = vmatprep.mubr.f32.mxu0 0.0
    %1757 = vmatmul.mubr.f32.gmra.mrb[0].mxu0 %v1379
    %v1758 = vpop.f32.mrb[0].mxu0
    %v1759 = vadd.f32 %v1439, %v1758
    %v1760 = vpop.f32.mrb[0].mxu0
    %v1761 = vadd.f32 %v1443, %v1760
    %1762 = vmatprep.mubr.f32.mxu0 0.0
    %1763 = vmatmul.mubr.f32.gmra.mrb[0].mxu0 %v1380
    %v1764 = vpop.f32.mrb[0].mxu0
    %v1765 = vadd.f32 %v1439, %v1764
    %v1766 = vpop.f32.mrb[0].mxu0
    %v1767 = vadd.f32 %v1443, %v1766
    %1768 = vmatprep.mubr.f32.mxu0 0.0
    %1769 = vmatmul.mubr.f32.gmra.mrb[0].mxu0 %v1381
    %v1770 = vpop.f32.mrb[0].mxu0
    %v1771 = vadd.f32 %v1439, %v1770
    %v1772 = vpop.f32.mrb[0].mxu0
    %v1773 = vadd.f32 %v1443, %v1772
    %1774 = vmatprep.mubr.f32.mxu0 0.0
    %1775 = vmatmul.mubr.f32.gmra.mrb[0].mxu0 %v1382
    %v1776 = vpop.f32.mrb[0].mxu0
    %v1777 = vadd.f32 %v1439, %v1776
    %v1778 = vpop.f32.mrb[0].mxu0
    %v1779 = vadd.f32 %v1443, %v1778
    %1780 = vmatprep.mubr.f32.mxu0 0.0
    %1781 = vmatmul.mubr.f32.gmra.mrb[0].mxu0 %v1383
    %v1782 = vpop.f32.mrb[0].mxu0
    %v1783 = vadd.f32 %v1439, %v1782
    %v1784 = vpop.f32.mrb[0].mxu0
    %v1785 = vadd.f32 %v1443, %v1784
    %1786 = vmatprep.mubr.f32.mxu0 0.0
    %1787 = vmatmul.mubr.f32.gmra.mrb[0].mxu0 %v1384
    %v1788 = vpop.f32.mrb[0].mxu0
    %v1789 = vadd.f32 %v1439, %v1788
    %v1790 = vpop.f32.mrb[0].mxu0
    %v1791 = vadd.f32 %v1443, %v1790
    %1792 = vmatprep.mubr.f32.mxu0 0.0
    %1793 = vmatmul.mubr.f32.gmra.mrb[0].mxu0 %v1385
    %v1794 = vpop.f32.mrb[0].mxu0
    %v1795 = vadd.f32 %v1439, %v1794
    %v1796 = vpop.f32.mrb[0].mxu0
    %v1797 = vadd.f32 %v1443, %v1796
    %1798 = vmatprep.mubr.f32.mxu0 0.0
    %1799 = vmatmul.mubr.f32.gmra.mrb[0].mxu0 %v1386
    %v1800 = vpop.f32.mrb[0].mxu0
    %v1801 = vadd.f32 %v1439, %v1800
    %v1802 = vpop.f32.mrb[0].mxu0
    %v1803 = vadd.f32 %v1443, %v1802
    %1804 = vmatprep.mubr.f32.mxu0 0.0
    %1805 = vmatmul.mubr.f32.gmra.mrb[0].mxu0 %v1387
    %v1806 = vpop.f32.mrb[0].mxu0
    %v1807 = vadd.f32 %v1439, %v1806
    %v1808 = vpop.f32.mrb[0].mxu0
    %v1809 = vadd.f32 %v1443, %v1808
    %1810 = vmatprep.mubr.f32.mxu0 0.0
    %1811 = vmatmul.mubr.f32.gmra.mrb[0].mxu0 %v1388
    %v1812 = vpop.f32.mrb[0].mxu0
    %v1813 = vadd.f32 %v1439, %v1812
    %v1814 = vpop.f32.mrb[0].mxu0
    %v1815 = vadd.f32 %v1443, %v1814
    %1816 = vmatprep.mubr.f32.mxu0 0.0
    %1817 = vmatmul.mubr.f32.gmra.mrb[0].mxu0 %v1389
    %v1818 = vpop.f32.mrb[0].mxu0
    %v1819 = vadd.f32 %v1439, %v1818
    %v1820 = vpop.f32.mrb[0].mxu0
    %v1821 = vadd.f32 %v1443, %v1820
    %1822 = vmatprep.mubr.f32.mxu0 0.0
    %1823 = vmatmul.mubr.f32.gmra.mrb[0].mxu0 %v1390
    %v1824 = vpop.f32.mrb[0].mxu0
    %v1825 = vadd.f32 %v1439, %v1824
    %v1826 = vpop.f32.mrb[0].mxu0
    %v1827 = vadd.f32 %v1443, %v1826
    %1828 = vmatprep.mubr.f32.mxu0 0.0
    %1829 = vmatmul.mubr.f32.gmra.mrb[0].mxu0 %v1391
    %v1830 = vpop.f32.mrb[0].mxu0
    %v1831 = vadd.f32 %v1439, %v1830
    %v1832 = vpop.f32.mrb[0].mxu0
    %v1833 = vadd.f32 %v1443, %v1832
    %1834 = vmatprep.mubr.f32.mxu0 0.0
    %1835 = vmatmul.mubr.f32.gmra.mrb[0].mxu0 %v1392
    %v1836 = vpop.f32.mrb[0].mxu0
    %v1837 = vadd.f32 %v1439, %v1836
    %v1838 = vpop.f32.mrb[0].mxu0
    %v1839 = vadd.f32 %v1443, %v1838
    %1840 = vmatprep.mubr.f32.mxu0 0.0
    %1841 = vmatmul.mubr.f32.gmra.mrb[0].mxu0 %v1393
    %v1842 = vpop.f32.mrb[0].mxu0
    %v1843 = vadd.f32 %v1439, %v1842
    %v1844 = vpop.f32.mrb[0].mxu0
    %v1845 = vadd.f32 %v1443, %v1844
    %1846 = vmatprep.mubr.f32.mxu0 0.0
    %1847 = vmatmul.mubr.f32.gmra.mrb[0].mxu0 %v1394
    %v1848 = vpop.f32.mrb[0].mxu0
    %v1849 = vadd.f32 %v1439, %v1848
    %v1850 = vpop.f32.mrb[0].mxu0
    %v1851 = vadd.f32 %v1443, %v1850
    %1852 = vmatprep.mubr.f32.mxu0 0.0
    %1853 = vmatmul.mubr.f32.gmra.mrb[0].mxu0 %v1395
    %v1854 = vpop.f32.mrb[0].mxu0
    %v1855 = vadd.f32 %v1439, %v1854
    %v1856 = vpop.f32.mrb[0].mxu0
    %v1857 = vadd.f32 %v1443, %v1856
    %1858 = vmatprep.mubr.f32.mxu0 0.0
    %1859 = vmatmul.mubr.f32.gmra.mrb[0].mxu0 %v1396
    %v1860 = vpop.f32.mrb[0].mxu0
    %v1861 = vadd.f32 %v1439, %v1860
    %v1862 = vpop.f32.mrb[0].mxu0
    %v1863 = vadd.f32 %v1443, %v1862
    %1864 = vmatprep.mubr.f32.mxu0 0.0
    %1865 = vmatmul.mubr.f32.gmra.mrb[0].mxu0 %v1397
    %v1866 = vpop.f32.mrb[0].mxu0
    %v1867 = vadd.f32 %v1439, %v1866
    %v1868 = vpop.f32.mrb[0].mxu0
    %v1869 = vadd.f32 %v1443, %v1868
    %1870 = vmatprep.mubr.f32.mxu0 0.0
    %1871 = vmatmul.mubr.f32.gmra.mrb[0].mxu0 %v1398
    %v1872 = vpop.f32.mrb[0].mxu0
    %v1873 = vadd.f32 %v1439, %v1872
    %v1874 = vpop.f32.mrb[0].mxu0
    %v1875 = vadd.f32 %v1443, %v1874
    %1876 = vmatprep.mubr.f32.mxu0 0.0
    %1877 = vmatmul.mubr.f32.gmra.mrb[0].mxu0 %v1399
    %v1878 = vpop.f32.mrb[0].mxu0
    %v1879 = vadd.f32 %v1439, %v1878
    %v1880 = vpop.f32.mrb[0].mxu0
    %v1881 = vadd.f32 %v1443, %v1880
    %1882 = vmatprep.mubr.f32.mxu0 0.0
    %1883 = vmatmul.mubr.f32.gmra.mrb[0].mxu0 %v1400
    %v1884 = vpop.f32.mrb[0].mxu0
    %v1885 = vadd.f32 %v1439, %v1884
    %v1886 = vpop.f32.mrb[0].mxu0
    %v1887 = vadd.f32 %v1443, %v1886
    %1888 = vmatprep.mubr.f32.mxu0 0.0
    %1889 = vmatmul.mubr.f32.gmra.mrb[0].mxu0 %v1401
    %v1890 = vpop.f32.mrb[0].mxu0
    %v1891 = vadd.f32 %v1439, %v1890
    %v1892 = vpop.f32.mrb[0].mxu0
    %v1893 = vadd.f32 %v1443, %v1892
    %1894 = vdwg.mxu0
    %1895 = vst [vmem:[#allocation2] sm:$0xff] %v1513
    %1896 = vst [vmem:[#allocation2 + $0x8] sm:$0xff] %v1515
    %1897 = vst [vmem:[#allocation2 + $0x10] sm:$0xff] %v1519
    %1898 = vst [vmem:[#allocation2 + $0x18] sm:$0xff] %v1521
    %1899 = vst [vmem:[#allocation2 + $0x20] sm:$0xff] %v1525
    %1900 = vst [vmem:[#allocation2 + $0x28] sm:$0xff] %v1527
    %1901 = vst [vmem:[#allocation2 + $0x30] sm:$0xff] %v1531
    %1902 = vst [vmem:[#allocation2 + $0x38] sm:$0xff] %v1533
    %1903 = vst [vmem:[#allocation2 + $0x40] sm:$0xff] %v1537
    %1904 = vst [vmem:[#allocation2 + $0x48] sm:$0xff] %v1539
    %1905 = vst [vmem:[#allocation2 + $0x50] sm:$0xff] %v1543
    %1906 = vst [vmem:[#allocation2 + $0x58] sm:$0xff] %v1545
    %1907 = vst [vmem:[#allocation2 + $0x60] sm:$0xff] %v1549
    %1908 = vst [vmem:[#allocation2 + $0x68] sm:$0xff] %v1551
    %1909 = vst [vmem:[#allocation2 + $0x70] sm:$0xff] %v1555
    %1910 = vst [vmem:[#allocation2 + $0x78] sm:$0xff] %v1557
    %1911 = vst [vmem:[#allocation2 + $0x80] sm:$0xff] %v1561
    %1912 = vst [vmem:[#allocation2 + $0x88] sm:$0xff] %v1563
    %1913 = vst [vmem:[#allocation2 + $0x90] sm:$0xff] %v1567
    %1914 = vst [vmem:[#allocation2 + $0x98] sm:$0xff] %v1569
    %1915 = vst [vmem:[#allocation2 + $0xa0] sm:$0xff] %v1573
    %1916 = vst [vmem:[#allocation2 + $0xa8] sm:$0xff] %v1575
    %1917 = vst [vmem:[#allocation2 + $0xb0] sm:$0xff] %v1579
    %1918 = vst [vmem:[#allocation2 + $0xb8] sm:$0xff] %v1581
    %1919 = vst [vmem:[#allocation2 + $0xc0] sm:$0xff] %v1585
    %1920 = vst [vmem:[#allocation2 + $0xc8] sm:$0xff] %v1587
    %1921 = vst [vmem:[#allocation2 + $0xd0] sm:$0xff] %v1591
    %1922 = vst [vmem:[#allocation2 + $0xd8] sm:$0xff] %v1593
    %1923 = vst [vmem:[#allocation2 + $0xe0] sm:$0xff] %v1597
    %1924 = vst [vmem:[#allocation2 + $0xe8] sm:$0xff] %v1599
    %1925 = vst [vmem:[#allocation2 + $0xf0] sm:$0xff] %v1603
    %1926 = vst [vmem:[#allocation2 + $0xf8] sm:$0xff] %v1605
    %1927 = vst [vmem:[#allocation2 + $0x100] sm:$0xff] %v1609
    %1928 = vst [vmem:[#allocation2 + $0x108] sm:$0xff] %v1611
    %1929 = vst [vmem:[#allocation2 + $0x110] sm:$0xff] %v1615
    %1930 = vst [vmem:[#allocation2 + $0x118] sm:$0xff] %v1617
    %1931 = vst [vmem:[#allocation2 + $0x120] sm:$0xff] %v1621
    %1932 = vst [vmem:[#allocation2 + $0x128] sm:$0xff] %v1623
    %1933 = vst [vmem:[#allocation2 + $0x130] sm:$0xff] %v1627
    %1934 = vst [vmem:[#allocation2 + $0x138] sm:$0xff] %v1629
    %1935 = vst [vmem:[#allocation2 + $0x140] sm:$0xff] %v1633
    %1936 = vst [vmem:[#allocation2 + $0x148] sm:$0xff] %v1635
    %1937 = vst [vmem:[#allocation2 + $0x150] sm:$0xff] %v1639
    %1938 = vst [vmem:[#allocation2 + $0x158] sm:$0xff] %v1641
    %1939 = vst [vmem:[#allocation2 + $0x160] sm:$0xff] %v1645
    %1940 = vst [vmem:[#allocation2 + $0x168] sm:$0xff] %v1647
    %1941 = vst [vmem:[#allocation2 + $0x170] sm:$0xff] %v1651
    %1942 = vst [vmem:[#allocation2 + $0x178] sm:$0xff] %v1653
    %1943 = vst [vmem:[#allocation2 + $0x180] sm:$0xff] %v1657
    %1944 = vst [vmem:[#allocation2 + $0x188] sm:$0xff] %v1659
    %1945 = vst [vmem:[#allocation2 + $0x190] sm:$0xff] %v1663
    %1946 = vst [vmem:[#allocation2 + $0x198] sm:$0xff] %v1665
    %1947 = vst [vmem:[#allocation2 + $0x1a0] sm:$0xff] %v1669
    %1948 = vst [vmem:[#allocation2 + $0x1a8] sm:$0xff] %v1671
    %1949 = vst [vmem:[#allocation2 + $0x1b0] sm:$0xff] %v1675
    %1950 = vst [vmem:[#allocation2 + $0x1b8] sm:$0xff] %v1677
    %1951 = vst [vmem:[#allocation2 + $0x1c0] sm:$0xff] %v1681
    %1952 = vst [vmem:[#allocation2 + $0x1c8] sm:$0xff] %v1683
    %1953 = vst [vmem:[#allocation2 + $0x1d0] sm:$0xff] %v1687
    %1954 = vst [vmem:[#allocation2 + $0x1d8] sm:$0xff] %v1689
    %1955 = vst [vmem:[#allocation2 + $0x1e0] sm:$0xff] %v1693
    %1956 = vst [vmem:[#allocation2 + $0x1e8] sm:$0xff] %v1695
    %1957 = vst [vmem:[#allocation2 + $0x1f0] sm:$0xff] %v1699
    %1958 = vst [vmem:[#allocation2 + $0x1f8] sm:$0xff] %v1701
    %1959 = vst [vmem:[#allocation2 + $0x200] sm:$0xff] %v1705
    %1960 = vst [vmem:[#allocation2 + $0x208] sm:$0xff] %v1707
    %1961 = vst [vmem:[#allocation2 + $0x210] sm:$0xff] %v1711
    %1962 = vst [vmem:[#allocation2 + $0x218] sm:$0xff] %v1713
    %1963 = vst [vmem:[#allocation2 + $0x220] sm:$0xff] %v1717
    %1964 = vst [vmem:[#allocation2 + $0x228] sm:$0xff] %v1719
    %1965 = vst [vmem:[#allocation2 + $0x230] sm:$0xff] %v1723
    %1966 = vst [vmem:[#allocation2 + $0x238] sm:$0xff] %v1725
    %1967 = vst [vmem:[#allocation2 + $0x240] sm:$0xff] %v1729
    %1968 = vst [vmem:[#allocation2 + $0x248] sm:$0xff] %v1731
    %1969 = vst [vmem:[#allocation2 + $0x250] sm:$0xff] %v1735
    %1970 = vst [vmem:[#allocation2 + $0x258] sm:$0xff] %v1737
    %1971 = vst [vmem:[#allocation2 + $0x260] sm:$0xff] %v1741
    %1972 = vst [vmem:[#allocation2 + $0x268] sm:$0xff] %v1743
    %1973 = vst [vmem:[#allocation2 + $0x270] sm:$0xff] %v1747
    %1974 = vst [vmem:[#allocation2 + $0x278] sm:$0xff] %v1749
    %1975 = vst [vmem:[#allocation2 + $0x280] sm:$0xff] %v1753
    %1976 = vst [vmem:[#allocation2 + $0x288] sm:$0xff] %v1755
    %1977 = vst [vmem:[#allocation2 + $0x290] sm:$0xff] %v1759
    %1978 = vst [vmem:[#allocation2 + $0x298] sm:$0xff] %v1761
    %1979 = vst [vmem:[#allocation2 + $0x2a0] sm:$0xff] %v1765
    %1980 = vst [vmem:[#allocation2 + $0x2a8] sm:$0xff] %v1767
    %1981 = vst [vmem:[#allocation2 + $0x2b0] sm:$0xff] %v1771
    %1982 = vst [vmem:[#allocation2 + $0x2b8] sm:$0xff] %v1773
    %1983 = vst [vmem:[#allocation2 + $0x2c0] sm:$0xff] %v1777
    %1984 = vst [vmem:[#allocation2 + $0x2c8] sm:$0xff] %v1779
    %1985 = vst [vmem:[#allocation2 + $0x2d0] sm:$0xff] %v1783
    %1986 = vst [vmem:[#allocation2 + $0x2d8] sm:$0xff] %v1785
    %1987 = vst [vmem:[#allocation2 + $0x2e0] sm:$0xff] %v1789
    %1988 = vst [vmem:[#allocation2 + $0x2e8] sm:$0xff] %v1791
    %1989 = vst [vmem:[#allocation2 + $0x2f0] sm:$0xff] %v1795
    %1990 = vst [vmem:[#allocation2 + $0x2f8] sm:$0xff] %v1797
    %1991 = vst [vmem:[#allocation2 + $0x300] sm:$0xff] %v1801
    %1992 = vst [vmem:[#allocation2 + $0x308] sm:$0xff] %v1803
    %1993 = vst [vmem:[#allocation2 + $0x310] sm:$0xff] %v1807
    %1994 = vst [vmem:[#allocation2 + $0x318] sm:$0xff] %v1809
    %1995 = vst [vmem:[#allocation2 + $0x320] sm:$0xff] %v1813
    %1996 = vst [vmem:[#allocation2 + $0x328] sm:$0xff] %v1815
    %1997 = vst [vmem:[#allocation2 + $0x330] sm:$0xff] %v1819
    %1998 = vst [vmem:[#allocation2 + $0x338] sm:$0xff] %v1821
    %1999 = vst [vmem:[#allocation2 + $0x340] sm:$0xff] %v1825
    %2000 = vst [vmem:[#allocation2 + $0x348] sm:$0xff] %v1827
    %2001 = vst [vmem:[#allocation2 + $0x350] sm:$0xff] %v1831
    %2002 = vst [vmem:[#allocation2 + $0x358] sm:$0xff] %v1833
    %2003 = vst [vmem:[#allocation2 + $0x360] sm:$0xff] %v1837
    %2004 = vst [vmem:[#allocation2 + $0x368] sm:$0xff] %v1839
    %2005 = vst [vmem:[#allocation2 + $0x370] sm:$0xff] %v1843
    %2006 = vst [vmem:[#allocation2 + $0x378] sm:$0xff] %v1845
    %2007 = vst [vmem:[#allocation2 + $0x380] sm:$0xff] %v1849
    %2008 = vst [vmem:[#allocation2 + $0x388] sm:$0xff] %v1851
    %2009 = vst [vmem:[#allocation2 + $0x390] sm:$0xff] %v1855
    %2010 = vst [vmem:[#allocation2 + $0x398] sm:$0xff] %v1857
    %2011 = vst [vmem:[#allocation2 + $0x3a0] sm:$0xff] %v1861
    %2012 = vst [vmem:[#allocation2 + $0x3a8] sm:$0xff] %v1863
    %2013 = vst [vmem:[#allocation2 + $0x3b0] sm:$0xff] %v1867
    %2014 = vst [vmem:[#allocation2 + $0x3b8] sm:$0xff] %v1869
    %2015 = vst [vmem:[#allocation2 + $0x3c0] sm:$0xff] %v1873
    %2016 = vst [vmem:[#allocation2 + $0x3c8] sm:$0xff] %v1875
    %2017 = vst [vmem:[#allocation2 + $0x3d0] sm:$0xff] %v1879
    %2018 = vst [vmem:[#allocation2 + $0x3d8] sm:$0xff] %v1881
    %2019 = vst [vmem:[#allocation2 + $0x3e0] sm:$0xff] %v1885
    %2020 = vst [vmem:[#allocation2 + $0x3e8] sm:$0xff] %v1887
    %2021 = vst [vmem:[#allocation2 + $0x3f0] sm:$0xff] %v1891
    %2022 = vst [vmem:[#allocation2 + $0x3f8] sm:$0xff] %v1893
    // Predicated region
    $region30: #{tpu_custom_call.1} parent=1 // pred_check
      _
    $region31: #{tpu_custom_call.1} parent=1 // pred_check_branch
      %2024 = sbr.rel (0) target = $region33
    $region32: #{tpu_custom_call.1} parent=1 // pred_region
      %s2026 = ssub.s32 16384, 16384
      %2027 = vsyncadd [#allocation3], %s2026
      %s2028 = sshll.u32 [#allocation2], 4
      %s2029 = int_to_ptr.vmem [resolvable:$true] %s2028
      %2034 = dma.vmem_to_hbm [thread:$0]  %s2029, 16384, %s7, [#allocation3], 256, 256, 16
    $region33: #{tpu_custom_call.1} parent=1 // pred_fallthru
      _
    // Predicated region
    $region34: #{tpu_custom_call.1} parent=1 // pred_check
      _
    $region35: #{tpu_custom_call.1} parent=1 // pred_check_branch
      %2036 = sbr.rel (0) target = $region37
    $region36: #{tpu_custom_call.1} parent=1 // pred_region
      %2037 = dma.done [#allocation3], 16384
    $region37: #{tpu_custom_call.1} parent=1 // pred_fallthru
      _
    %2038 = vsyncpa [#allocation3], 1

</llo_original>
